<compile_context>
chip_gen: v7x
topology: tpu7x:2x2x1
jax: 0.10.0
libtpu: 0.0.40
codegen_flags: <defaults>
</compile_context>

<pallas_src>
import functools

import numpy as np
import jax
import jax.numpy as jnp
from jax.experimental import pallas as pl
from jax.experimental.pallas import tpu as pltpu


def _cross_attn_kernel(x_ref, ctx_ref, mbias_ref, wq_ref, wkv_ref, wo_ref, bo_ref,
                       o_ref, kv_ref, oh_ref, *, heads, dim_head, cache_kv):
    """Fused Q/[K|V] projection + multi-head attention + output projection.

    Block shapes per (batch, query-tile) grid step:
      x_ref    : (1, TQ, D)      bf16  query tokens
      ctx_ref  : (1, M,  Dc)     bf16  context tokens
      mbias_ref: (1, TQ, 1)      f32   additive query-row mask (0 keep / -f32max drop)
      wq_ref   : (D,  H*dh)      bf16  (scale pre-folded)
      wkv_ref  : (Dc, 2*H*dh)    bf16  [Wk | Wv] fused
      wo_ref   : (H*dh, D)       bf16
      bo_ref   : (1, D)          f32
      o_ref    : (1, TQ, D)      f32   (lane-dense last dim)
      kv_ref   : (M, 2*H*dh)     bf16  VMEM scratch, persists across query tiles
      oh_ref   : (TQ, H*dh)      bf16  VMEM scratch, per-head outputs
    """
    inner = heads * dim_head

    def project_kv():
        kv_ref[...] = jnp.dot(ctx_ref[0], wkv_ref[...],
                              preferred_element_type=jnp.float32).astype(jnp.bfloat16)

    if cache_kv:
        # Query-tile axis is "arbitrary": scratch persists across it, so project
        # [K|V] only on the first query tile of each batch element.
        pl.when(pl.program_id(1) == 0)(project_kv)
    else:
        # B == 1 with multiple query tiles: keep the query axis "parallel"
        # (v7x megacore) and accept the per-tile KV recompute.
        project_kv()

    x = x_ref[0]                 # (TQ, D)  bf16
    mbias = mbias_ref[0]         # (TQ, 1)  f32 additive mask bias

    # Q projection; scale already folded into Wq on the host.
    q = jnp.dot(x, wq_ref[...], preferred_element_type=jnp.float32).astype(jnp.bfloat16)
    kv = kv_ref[...]

    # `heads` is small & static -> unrolled python loop; head split via static
    # lane slices of the 128-wide inner dim (no (B,H,N,d) reshape/transpose).
    for h in range(heads):
        sl = slice(h * dim_head, (h + 1) * dim_head)
        qh = q[:, sl]                                              # (TQ, dh)
        kh = kv[:, sl]                                             # (M, dh)
        vh = kv[:, inner + h * dim_head: inner + (h + 1) * dim_head]

        sim = jax.lax.dot_general(                                 # (TQ, M)
            qh, kh, (((1,), (1,)), ((), ())),
            preferred_element_type=jnp.float32)
        sim = sim + mbias                                          # query-row mask
        sim = sim - jnp.max(sim, axis=-1, keepdims=True)
        p = jnp.exp(sim)
        p = p * pl.reciprocal(jnp.sum(p, axis=-1, keepdims=True), approx=True)

        oh_ref[:, sl] = jnp.dot(p.astype(jnp.bfloat16), vh,
                                preferred_element_type=jnp.float32
                                ).astype(jnp.bfloat16)

    # Single K=inner output projection + bias (instead of `heads` K=dh matmuls).
    o_ref[0] = jnp.dot(oh_ref[...], wo_ref[...],
                       preferred_element_type=jnp.float32) + bo_ref[...]


def cross_attention(x, context, mask, params, *, heads, dim_head, q_tile=None):
    """Pallas forward of the PyTorch CrossAttention module.

    x: (B, N, query_dim).  context: (B, M, context_dim) or None (-> x).
    mask: (B, N) bool/float or None (per-query-row mask, torch broadcast semantics).
    to_out Dropout(p=0.0) is an identity.  Returns f32 (B, N, query_dim).
    """
    B, N, D = x.shape
    if context is None:
        context = x
    _, M, Dc = context.shape
    inner = heads * dim_head
    scale = dim_head ** (-0.5)

    neg = jnp.float32(-jnp.finfo(jnp.float32).max)
    if mask is None:
        mbias = jnp.zeros((B, N, 1), jnp.float32)
    else:
        mk = mask.reshape(B, -1)
        # torch broadcast of (b*h, j, 1) against (b*h, i, j) requires j == i.
        assert mk.shape[1] == N, "mask length must equal the query length"
        mbias = jnp.where(mk.astype(bool), jnp.float32(0.0), neg)[..., None]

    # scale folded into Wq (removes a heads x (TQ,M) f32 VPU multiply per step).
    wq = (params['wq'] * scale).astype(jnp.bfloat16)
    wkv = jnp.concatenate([params['wk'], params['wv']], axis=1).astype(jnp.bfloat16)
    wo = params['wo'].astype(jnp.bfloat16)
    bo = params['bo'].reshape(1, D).astype(jnp.float32)

    # bf16 min sublane tile is 16 -> require TQ % 16 == 0.  Default 256 is
    # VMEM-safe on v7x; v5e/v6e (128 MiB VMEM) can pass q_tile=512.
    TQ = q_tile if q_tile is not None else min(N, 256)
    assert N % TQ == 0 and TQ % 16 == 0, "query tile must divide N and be 16-aligned"
    n_qt = N // TQ
    grid = (B, n_qt)

    cache_kv = (B >= 2) or (n_qt == 1)
    dim_sems = ("parallel", "arbitrary") if cache_kv else ("parallel", "parallel")

    kern = functools.partial(_cross_attn_kernel, heads=heads, dim_head=dim_head,
                             cache_kv=cache_kv)
    return pl.pallas_call(
        kern,
        out_shape=jax.ShapeDtypeStruct((B, N, D), jnp.float32),
        grid=grid,
        in_specs=[
            pl.BlockSpec((1, TQ, D), lambda b, i: (b, i, 0)),      # x
            pl.BlockSpec((1, M, Dc), lambda b, i: (b, 0, 0)),      # context
            pl.BlockSpec((1, TQ, 1), lambda b, i: (b, i, 0)),      # mask bias
            pl.BlockSpec((D, inner), lambda b, i: (0, 0)),         # Wq (scaled)
            pl.BlockSpec((Dc, 2 * inner), lambda b, i: (0, 0)),    # [Wk|Wv]
            pl.BlockSpec((inner, D), lambda b, i: (0, 0)),         # Wo
            pl.BlockSpec((1, D), lambda b, i: (0, 0)),             # bo
        ],
        out_specs=pl.BlockSpec((1, TQ, D), lambda b, i: (b, i, 0)),
        scratch_shapes=[
            pltpu.VMEM((M, 2 * inner), jnp.bfloat16),              # cached [K|V]
            pltpu.VMEM((TQ, inner), jnp.bfloat16),                 # per-head outputs
        ],
        compiler_params=pltpu.CompilerParams(
            dimension_semantics=dim_sems,
            vmem_limit_bytes=64 * 1024 * 1024),
    )(x.astype(jnp.bfloat16), context.astype(jnp.bfloat16), mbias,
      wq, wkv, wo, bo)


# ----------------------------- pure-JAX reference -----------------------------

def cross_attention_ref(x, context, mask, params, *, heads, dim_head):
    if context is None:
        context = x
    B, N, _ = x.shape
    M = context.shape[1]
    inner = heads * dim_head
    scale = dim_head ** (-0.5)
    f32 = lambda a: a.astype(jnp.bfloat16).astype(jnp.float32)  # match kernel boundary cast
    q = f32(x) @ f32(params['wq'])
    k = f32(context) @ f32(params['wk'])
    v = f32(context) @ f32(params['wv'])
    split = lambda t, L: t.reshape(B, L, heads, dim_head).transpose(0, 2, 1, 3)
    q, k, v = split(q, N), split(k, M), split(v, M)
    sim = jnp.einsum('bhnd,bhmd->bhnm', q, k) * scale
    if mask is not None:
        mk = mask.reshape(B, -1).astype(bool)
        sim = jnp.where(mk[:, None, :, None], sim, -jnp.finfo(jnp.float32).max)
    attn = jax.nn.softmax(sim, axis=-1)
    out = jnp.einsum('bhnm,bhmd->bhnd', attn, v)
    out = out.transpose(0, 2, 1, 3).reshape(B, N, inner)
    return out @ f32(params['wo']) + params['bo'][None, None, :]


# ----------------------------- main -----------------------------

if __name__ == "__main__":
    key = jax.random.PRNGKey(0)
    B, N, M = 2, 128, 64                     # batch, query tokens, context tokens
    query_dim = 128
    context_dim = 128
    heads, dim_head = 2, 64                  # inner = 128 (lane-dense)
    inner = heads * dim_head

    kq, kk, kv_, ko, kb, kx, kc, km = jax.random.split(key, 8)
    std = 0.05
    params = dict(
        wq=(std * jax.random.normal(kq, (query_dim, inner))).astype(jnp.float32),
        wk=(std * jax.random.normal(kk, (context_dim, inner))).astype(jnp.float32),
        wv=(std * jax.random.normal(kv_, (context_dim, inner))).astype(jnp.float32),
        wo=(std * jax.random.normal(ko, (inner, query_dim))).astype(jnp.float32),
        bo=(std * jax.random.normal(kb, (query_dim,))).astype(jnp.float32),
    )
    x = jax.random.normal(kx, (B, N, query_dim), dtype=jnp.float32)
    ctx = jax.random.normal(kc, (B, M, context_dim), dtype=jnp.float32)
    mask = jax.random.bernoulli(km, 0.75, (B, N))

    ref = cross_attention_ref(x, ctx, mask, params, heads=heads, dim_head=dim_head)

    # Default tile (single query tile per batch element).
    out = cross_attention(x, ctx, mask, params, heads=heads, dim_head=dim_head)
    out = jax.block_until_ready(out)
    assert out.shape == (B, N, query_dim), out.shape
    assert bool(jnp.all(jnp.isfinite(out)))
    np.testing.assert_allclose(np.asarray(out), np.asarray(ref), atol=2e-2, rtol=2e-2)

    # Multi-tile path: exercises the cached-KV (@pl.when) branch across query tiles.
    out2 = cross_attention(x, ctx, mask, params, heads=heads, dim_head=dim_head,
                           q_tile=64)
    out2 = jax.block_until_ready(out2)
    np.testing.assert_allclose(np.asarray(out2), np.asarray(ref), atol=2e-2, rtol=2e-2)

    print("KERNEL_OK")
</pallas_src>

<mosaic_0001>
module attributes {stable_mosaic.version = 11 : i64} {
  func.func @_cross_attn_kernel(%arg0: i32, %arg1: i32, %arg2: memref<1x128x128xbf16, #tpu.memory_space<vmem>>, %arg3: memref<1x64x128xbf16, #tpu.memory_space<vmem>>, %arg4: memref<1x128x1xf32, #tpu.memory_space<vmem>>, %arg5: memref<128x128xbf16, #tpu.memory_space<vmem>>, %arg6: memref<128x256xbf16, #tpu.memory_space<vmem>>, %arg7: memref<128x128xbf16, #tpu.memory_space<vmem>>, %arg8: memref<1x128xf32, #tpu.memory_space<vmem>>, %arg9: memref<1x128x128xf32, #tpu.memory_space<vmem>>, %arg10: memref<64x256xbf16, #tpu.memory_space<vmem>>, %arg11: memref<128x128xbf16, #tpu.memory_space<vmem>>) attributes {dimension_semantics = [#tpu.dimension_semantics<parallel>, #tpu.dimension_semantics<arbitrary>], iteration_bounds = array<i64: 2, 1>, scalar_prefetch = 0 : i64, scratch_operands = 2 : i64, tpu.core_type = #tpu.core_type<tc>, window_params = [{transform_indices = @transform_0, window_bounds = array<i64: 1, 128, 128>}, {transform_indices = @transform_1, window_bounds = array<i64: 1, 64, 128>}, {transform_indices = @transform_2, window_bounds = array<i64: 1, 128, 1>}, {pipeline_mode = #tpu.pipeline_mode<synchronous>, transform_indices = @transform_3, window_bounds = array<i64: 128, 128>}, {pipeline_mode = #tpu.pipeline_mode<synchronous>, transform_indices = @transform_4, window_bounds = array<i64: 128, 256>}, {pipeline_mode = #tpu.pipeline_mode<synchronous>, transform_indices = @transform_5, window_bounds = array<i64: 128, 128>}, {pipeline_mode = #tpu.pipeline_mode<synchronous>, transform_indices = @transform_6, window_bounds = array<i64: 1, 128>}, {transform_indices = @transform_7, window_bounds = array<i64: 1, 128, 128>}]} {
    %c0_i32 = arith.constant 0 : i32
    %0 = arith.cmpi eq, %arg1, %c0_i32 : i32
    %1 = arith.extui %0 : i1 to i32
    %c0_i32_0 = arith.constant 0 : i32
    %2 = arith.cmpi ne, %1, %c0_i32_0 : i32
    scf.if %2 {
      %c0_31 = arith.constant 0 : index
      %c0_32 = arith.constant 0 : index
      %c0_33 = arith.constant 0 : index
      %60 = vector.load %arg3[%c0_31, %c0_32, %c0_33] : memref<1x64x128xbf16, #tpu.memory_space<vmem>>, vector<1x64x128xbf16>
      %61 = vector.shape_cast %60 : vector<1x64x128xbf16> to vector<64x128xbf16>
      %c0_34 = arith.constant 0 : index
      %c0_35 = arith.constant 0 : index
      %62 = vector.load %arg6[%c0_34, %c0_35] : memref<128x256xbf16, #tpu.memory_space<vmem>>, vector<128x256xbf16>
      %cst_36 = arith.constant dense<0.000000e+00> : vector<64x256xf32>
      %63 = tpu.matmul %61, %62, %cst_36 {dimension_numbers = #tpu.dot_dimension_numbers<[1], [0], [0], [1], [0, 0, 1, 1], [], []>} : vector<64x128xbf16>, vector<128x256xbf16>, vector<64x256xf32> -> vector<64x256xf32>
      %64 = arith.truncf %63 : vector<64x256xf32> to vector<64x256xbf16>
      %c0_37 = arith.constant 0 : index
      %c0_38 = arith.constant 0 : index
      %65 = vector.load %arg10[%c0_37, %c0_38] : memref<64x256xbf16, #tpu.memory_space<vmem>>, vector<64x256xbf16>
      tpu.vector_store %arg10[%c0_37, %c0_38], %64 {strides = array<i32>} : memref<64x256xbf16, #tpu.memory_space<vmem>>, vector<64x256xbf16>,
    } else {
    }
    %c0 = arith.constant 0 : index
    %c0_1 = arith.constant 0 : index
    %c0_2 = arith.constant 0 : index
    %3 = vector.load %arg2[%c0, %c0_1, %c0_2] : memref<1x128x128xbf16, #tpu.memory_space<vmem>>, vector<1x128x128xbf16>
    %4 = vector.shape_cast %3 : vector<1x128x128xbf16> to vector<128x128xbf16>
    %c0_3 = arith.constant 0 : index
    %c0_4 = arith.constant 0 : index
    %c0_5 = arith.constant 0 : index
    %5 = vector.load %arg4[%c0_3, %c0_4, %c0_5] : memref<1x128x1xf32, #tpu.memory_space<vmem>>, vector<1x128x1xf32>
    %6 = vector.shape_cast %5 : vector<1x128x1xf32> to vector<128x1xf32>
    %c0_6 = arith.constant 0 : index
    %c0_7 = arith.constant 0 : index
    %7 = vector.load %arg5[%c0_6, %c0_7] : memref<128x128xbf16, #tpu.memory_space<vmem>>, vector<128x128xbf16>
    %cst = arith.constant dense<0.000000e+00> : vector<128x128xf32>
    %8 = tpu.matmul %4, %7, %cst {dimension_numbers = #tpu.dot_dimension_numbers<[1], [0], [0], [1], [0, 0, 1, 1], [], []>} : vector<128x128xbf16>, vector<128x128xbf16>, vector<128x128xf32> -> vector<128x128xf32>
    %9 = arith.truncf %8 : vector<128x128xf32> to vector<128x128xbf16>
    %c0_8 = arith.constant 0 : index
    %c0_9 = arith.constant 0 : index
    %10 = vector.load %arg10[%c0_8, %c0_9] : memref<64x256xbf16, #tpu.memory_space<vmem>>, vector<64x256xbf16>
    %11 = vector.extract_strided_slice %9 {offsets = [0, 0], sizes = [128, 64], strides = [1, 1]} : vector<128x128xbf16> to vector<128x64xbf16>
    %12 = vector.extract_strided_slice %10 {offsets = [0, 0], sizes = [64, 64], strides = [1, 1]} : vector<64x256xbf16> to vector<64x64xbf16>
    %13 = vector.extract_strided_slice %10 {offsets = [0, 128], sizes = [64, 64], strides = [1, 1]} : vector<64x256xbf16> to vector<64x64xbf16>
    %cst_10 = arith.constant dense<0.000000e+00> : vector<128x64xf32>
    %14 = tpu.matmul %11, %12, %cst_10 {dimension_numbers = #tpu.dot_dimension_numbers<[1], [1], [0], [0], [0, 0, 1, 0], [], []>} : vector<128x64xbf16>, vector<64x64xbf16>, vector<128x64xf32> -> vector<128x64xf32>
    %15 = vector.broadcast %6 : vector<128x1xf32> to vector<128x64xf32>
    %16 = arith.addf %14, %15 : vector<128x64xf32>
    %cst_11 = arith.constant dense<0xFF800000> : vector<128xf32>
    %17 = vector.multi_reduction <maximumf>, %16, %cst_11 [1] : vector<128x64xf32> to vector<128xf32>
    %18 = vector.shape_cast %17 : vector<128xf32> to vector<128x1xf32>
    %19 = vector.broadcast %18 : vector<128x1xf32> to vector<128x64xf32>
    %20 = arith.subf %16, %19 : vector<128x64xf32>
    %21 = math.exp %20 : vector<128x64xf32>
    %cst_12 = arith.constant dense<0.000000e+00> : vector<128xf32>
    %22 = vector.multi_reduction <add>, %21, %cst_12 [1] : vector<128x64xf32> to vector<128xf32>
    %23 = vector.shape_cast %22 : vector<128xf32> to vector<128x1xf32>
    %24 = tpu.reciprocal %23 {approx = true} : vector<128x1xf32> -> vector<128x1xf32>
    %25 = vector.broadcast %24 : vector<128x1xf32> to vector<128x64xf32>
    %26 = arith.mulf %21, %25 : vector<128x64xf32>
    %27 = arith.truncf %26 : vector<128x64xf32> to vector<128x64xbf16>
    %cst_13 = arith.constant dense<0.000000e+00> : vector<128x64xf32>
    %28 = tpu.matmul %27, %13, %cst_13 {dimension_numbers = #tpu.dot_dimension_numbers<[1], [0], [0], [1], [0, 0, 1, 1], [], []>} : vector<128x64xbf16>, vector<64x64xbf16>, vector<128x64xf32> -> vector<128x64xf32>
    %29 = arith.truncf %28 : vector<128x64xf32> to vector<128x64xbf16>
    %c0_14 = arith.constant 0 : index
    %c0_15 = arith.constant 0 : index
    %30 = vector.load %arg11[%c0_14, %c0_15] : memref<128x128xbf16, #tpu.memory_space<vmem>>, vector<128x64xbf16>
    tpu.vector_store %arg11[%c0_14, %c0_15], %29 {strides = array<i32>} : memref<128x128xbf16, #tpu.memory_space<vmem>>, vector<128x64xbf16>,
    %31 = vector.extract_strided_slice %9 {offsets = [0, 64], sizes = [128, 64], strides = [1, 1]} : vector<128x128xbf16> to vector<128x64xbf16>
    %32 = vector.extract_strided_slice %10 {offsets = [0, 64], sizes = [64, 64], strides = [1, 1]} : vector<64x256xbf16> to vector<64x64xbf16>
    %33 = vector.extract_strided_slice %10 {offsets = [0, 192], sizes = [64, 64], strides = [1, 1]} : vector<64x256xbf16> to vector<64x64xbf16>
    %cst_16 = arith.constant dense<0.000000e+00> : vector<128x64xf32>
    %34 = tpu.matmul %31, %32, %cst_16 {dimension_numbers = #tpu.dot_dimension_numbers<[1], [1], [0], [0], [0, 0, 1, 0], [], []>} : vector<128x64xbf16>, vector<64x64xbf16>, vector<128x64xf32> -> vector<128x64xf32>
    %35 = vector.broadcast %6 : vector<128x1xf32> to vector<128x64xf32>
    %36 = arith.addf %34, %35 : vector<128x64xf32>
    %cst_17 = arith.constant dense<0xFF800000> : vector<128xf32>
    %37 = vector.multi_reduction <maximumf>, %36, %cst_17 [1] : vector<128x64xf32> to vector<128xf32>
    %38 = vector.shape_cast %37 : vector<128xf32> to vector<128x1xf32>
    %39 = vector.broadcast %38 : vector<128x1xf32> to vector<128x64xf32>
    %40 = arith.subf %36, %39 : vector<128x64xf32>
    %41 = math.exp %40 : vector<128x64xf32>
    %cst_18 = arith.constant dense<0.000000e+00> : vector<128xf32>
    %42 = vector.multi_reduction <add>, %41, %cst_18 [1] : vector<128x64xf32> to vector<128xf32>
    %43 = vector.shape_cast %42 : vector<128xf32> to vector<128x1xf32>
    %44 = tpu.reciprocal %43 {approx = true} : vector<128x1xf32> -> vector<128x1xf32>
    %45 = vector.broadcast %44 : vector<128x1xf32> to vector<128x64xf32>
    %46 = arith.mulf %41, %45 : vector<128x64xf32>
    %47 = arith.truncf %46 : vector<128x64xf32> to vector<128x64xbf16>
    %cst_19 = arith.constant dense<0.000000e+00> : vector<128x64xf32>
    %48 = tpu.matmul %47, %33, %cst_19 {dimension_numbers = #tpu.dot_dimension_numbers<[1], [0], [0], [1], [0, 0, 1, 1], [], []>} : vector<128x64xbf16>, vector<64x64xbf16>, vector<128x64xf32> -> vector<128x64xf32>
    %49 = arith.truncf %48 : vector<128x64xf32> to vector<128x64xbf16>
    %c0_20 = arith.constant 0 : index
    %c64 = arith.constant 64 : index
    %50 = vector.load %arg11[%c0_20, %c64] : memref<128x128xbf16, #tpu.memory_space<vmem>>, vector<128x64xbf16>
    tpu.vector_store %arg11[%c0_20, %c64], %49 {strides = array<i32>} : memref<128x128xbf16, #tpu.memory_space<vmem>>, vector<128x64xbf16>,
    %c0_21 = arith.constant 0 : index
    %c0_22 = arith.constant 0 : index
    %51 = vector.load %arg11[%c0_21, %c0_22] : memref<128x128xbf16, #tpu.memory_space<vmem>>, vector<128x128xbf16>
    %c0_23 = arith.constant 0 : index
    %c0_24 = arith.constant 0 : index
    %52 = vector.load %arg7[%c0_23, %c0_24] : memref<128x128xbf16, #tpu.memory_space<vmem>>, vector<128x128xbf16>
    %cst_25 = arith.constant dense<0.000000e+00> : vector<128x128xf32>
    %53 = tpu.matmul %51, %52, %cst_25 {dimension_numbers = #tpu.dot_dimension_numbers<[1], [0], [0], [1], [0, 0, 1, 1], [], []>} : vector<128x128xbf16>, vector<128x128xbf16>, vector<128x128xf32> -> vector<128x128xf32>
    %c0_26 = arith.constant 0 : index
    %c0_27 = arith.constant 0 : index
    %54 = vector.load %arg8[%c0_26, %c0_27] : memref<1x128xf32, #tpu.memory_space<vmem>>, vector<1x128xf32>
    %55 = vector.broadcast %54 : vector<1x128xf32> to vector<128x128xf32>
    %56 = arith.addf %53, %55 : vector<128x128xf32>
    %c0_28 = arith.constant 0 : index
    %c0_29 = arith.constant 0 : index
    %c0_30 = arith.constant 0 : index
    %57 = vector.load %arg9[%c0_28, %c0_29, %c0_30] : memref<1x128x128xf32, #tpu.memory_space<vmem>>, vector<1x128x128xf32>
    %58 = vector.shape_cast %57 : vector<1x128x128xf32> to vector<128x128xf32>
    %59 = vector.shape_cast %56 : vector<128x128xf32> to vector<1x128x128xf32>
    tpu.vector_store %arg9[%c0_28, %c0_29, %c0_30], %59 {strides = array<i32>} : memref<1x128x128xf32, #tpu.memory_space<vmem>>, vector<1x128x128xf32>,
    return
  }
  func.func @transform_0(%arg0: i32, %arg1: i32) -> (i32, i32, i32) {
    %c0_i32 = arith.constant 0 : i32
    %c0_i32_0 = arith.constant 0 : i32
    return %arg0, %arg1, %c0_i32 : i32, i32, i32
  }
  func.func @transform_1(%arg0: i32, %arg1: i32) -> (i32, i32, i32) {
    %c0_i32 = arith.constant 0 : i32
    %c0_i32_0 = arith.constant 0 : i32
    %c0_i32_1 = arith.constant 0 : i32
    return %arg0, %c0_i32, %c0_i32_0 : i32, i32, i32
  }
  func.func @transform_2(%arg0: i32, %arg1: i32) -> (i32, i32, i32) {
    %c0_i32 = arith.constant 0 : i32
    %c0_i32_0 = arith.constant 0 : i32
    return %arg0, %arg1, %c0_i32 : i32, i32, i32
  }
  func.func @transform_3(%arg0: i32, %arg1: i32) -> (i32, i32) {
    %c0_i32 = arith.constant 0 : i32
    %c0_i32_0 = arith.constant 0 : i32
    %c0_i32_1 = arith.constant 0 : i32
    return %c0_i32, %c0_i32_0 : i32, i32
  }
  func.func @transform_4(%arg0: i32, %arg1: i32) -> (i32, i32) {
    %c0_i32 = arith.constant 0 : i32
    %c0_i32_0 = arith.constant 0 : i32
    %c0_i32_1 = arith.constant 0 : i32
    return %c0_i32, %c0_i32_0 : i32, i32
  }
  func.func @transform_5(%arg0: i32, %arg1: i32) -> (i32, i32) {
    %c0_i32 = arith.constant 0 : i32
    %c0_i32_0 = arith.constant 0 : i32
    %c0_i32_1 = arith.constant 0 : i32
    return %c0_i32, %c0_i32_0 : i32, i32
  }
  func.func @transform_6(%arg0: i32, %arg1: i32) -> (i32, i32) {
    %c0_i32 = arith.constant 0 : i32
    %c0_i32_0 = arith.constant 0 : i32
    %c0_i32_1 = arith.constant 0 : i32
    return %c0_i32, %c0_i32_0 : i32, i32
  }
  func.func @transform_7(%arg0: i32, %arg1: i32) -> (i32, i32, i32) {
    %c0_i32 = arith.constant 0 : i32
    %c0_i32_0 = arith.constant 0 : i32
    return %arg0, %arg1, %c0_i32 : i32, i32, i32
  }
}

</mosaic_0001>

<llo_original>
// kernel: tpu_custom_call.1
$region0: #{tpu_custom_call.1}
  #allocation0 [shape = 'u32[]', space=smem, size = 0x4, offset = 0x4, fixed_abs, tag = 'smem constant byte address 0x4 - core index']
  #allocation1 [shape = 'u32[144,128]{1,0:T(1,128)}', space=vmem, size = 0x12000, scoped, tag = 'internal scratch']
  #allocation2 [shape = 'bf16[64,256]{1,0:T(16,128)(2,1)}', space=vmem, size = 0x8000, scoped, tag = 'scratch operand']
  #allocation3 [shape = 'bf16[128,128]{1,0:T(16,128)(2,1)}', space=vmem, size = 0x8000, scoped, tag = 'scratch operand']
  %s0 = inlined_call_operand.hbm [shape: bf16[2,128,128], index: 0, kind: input, shape index: {}]
  %s1 = inlined_call_operand.hbm [shape: bf16[2,64,128], index: 1, kind: input, shape index: {}]
  %s2 = inlined_call_operand.hbm [shape: f32[2,128,1], index: 2, kind: input, shape index: {}]
  %s3 = inlined_call_operand.hbm [shape: bf16[128,128], index: 3, kind: input, shape index: {}]
  %s4 = inlined_call_operand.hbm [shape: bf16[128,256], index: 4, kind: input, shape index: {}]
  %s5 = inlined_call_operand.hbm [shape: bf16[128,128], index: 5, kind: input, shape index: {}]
  %s6 = inlined_call_operand.hbm [shape: f32[1,128], index: 6, kind: input, shape index: {}]
  %s7 = inlined_call_operand.hbm [shape: f32[2,128,128], index: 7, kind: output, shape index: {}]
  %s8 = sld [smem:[#allocation0]]
  $region93: #{tpu_custom_call.1} parent=0
    _
  %s10 = ssub.s32 1, %s8
  %s11 = scalar_select 0, %s10, %s8
  $region1: #{tpu_custom_call.1} parent=0
    #allocation4 [shape = 'u8[65536]{0}', space=vmem, size = 0x10000, scoped, tag = 'input window, operand 0']
    #allocation5 [shape = 's32[2]{0}', space=sflag, size = 0x8, scoped, tag = 'scoped memory for tpu_custom_call.1']
    #allocation6 [shape = 's32[2]{0}', space=sflag, size = 0x8, scoped, tag = 'scoped memory for tpu_custom_call.1']
    #allocation7 [shape = 'u8[32768]{0}', space=vmem, size = 0x8000, scoped, tag = 'input window, operand 1']
    #allocation8 [shape = 's32[2]{0}', space=sflag, size = 0x8, scoped, tag = 'scoped memory for tpu_custom_call.1']
    #allocation9 [shape = 'u8[131072]{0}', space=vmem, size = 0x20000, scoped, tag = 'input window, operand 2']
    #allocation10 [shape = 'u8[32768]{0}', space=vmem, size = 0x8000, scoped, tag = 'input window, operand 3, single buffered']
    #allocation11 [shape = 's32[1]{0}', space=sflag, size = 0x4, scoped, tag = 'scoped memory for tpu_custom_call.1']
    #allocation12 [shape = 'u8[65536]{0}', space=vmem, size = 0x10000, scoped, tag = 'input window, operand 4, single buffered']
    #allocation13 [shape = 'u8[32768]{0}', space=vmem, size = 0x8000, scoped, tag = 'input window, operand 5, single buffered']
    #allocation14 [shape = 's32[1]{0}', space=sflag, size = 0x4, scoped, tag = 'scoped memory for tpu_custom_call.1']
    #allocation15 [shape = 'u8[512]{0}', space=vmem, size = 0x400, scoped, tag = 'input window, operand 6, single buffered']
    #allocation16 [shape = 'u8[131072]{0}', space=vmem, size = 0x20000, scoped, tag = 'output window, operand 0']
    %12 = vsyncpa [#allocation5], 0
    %s13 = scalar_lea.sflag [#allocation5], 1
    %14 = vsyncpa %s13, 0
    %15 = vsyncpa [#allocation8], 0
    %s16 = scalar_lea.sflag [#allocation8], 1
    %17 = vsyncpa %s16, 0
    %18 = vsyncpa [#allocation11], 0
    %19 = vsyncpa [#allocation14], 0
    %20 = vsyncpa [#allocation6], 0
    %s21 = scalar_lea.sflag [#allocation6], 1
    %22 = vsyncpa %s21, 0
    loop: start=0, step=1, limit=4
    $region2: #{tpu_custom_call.1} parent=1 // loop_pre_header
      _
    $region3: #{tpu_custom_call.1} parent=1 // loop_header
      %s24 = sphi 0, %s28
      %p25 = scmp.ge.s32.totalorder %s24, 4
      %s31 = sphi 0, %s43
      %s32 = sphi 0, %s39
      %s33 = sphi 0, %s31
      %s34 = sphi 0, %s32
      %s35 = sphi 0, %s33
      %s36 = sphi 0, %s34
      %s48 = sphi 0, %s50
      %s51 = sphi 0, %s48
      %s52 = sphi 0, %s51
      %s68 = sphi 0, %s52
      %s74 = sphi 0, %s76
      %s77 = sphi 0, %s74
      %s78 = sphi 0, %s77
      %s94 = sphi 0, %s78
      %s102 = sphi 0, %s104
      %s105 = sphi 0, %s102
      %s106 = sphi 0, %s105
      %s122 = sphi 0, %s106
      %s126 = sphi 0, %s126
      %s128 = sphi 0, %s126
      %s129 = sphi 0, %s128
      %s143 = sphi 0, %s129
      %s147 = sphi 0, %s147
      %s149 = sphi 0, %s147
      %s150 = sphi 0, %s149
      %s164 = sphi 0, %s150
      %s168 = sphi 0, %s168
      %s170 = sphi 0, %s168
      %s171 = sphi 0, %s170
      %s185 = sphi 0, %s171
      %s189 = sphi 0, %s189
      %s191 = sphi 0, %s189
      %s192 = sphi 0, %s191
      %s206 = sphi 0, %s192
      %s214 = sphi 0, %s216
      %s217 = sphi 0, %s214
      %s218 = sphi 0, %s217
      %s234 = sphi 0, %s218
    $region4: #{tpu_custom_call.1} parent=1 // loop_header_branch
      %27 = sbr.rel (%p25) target = $region8
    $region5: #{tpu_custom_call.1} parent=1 // loop_body
      %s29 = ssub.s32 %s24, 1
      %s30 = ssub.s32 %s24, 2
      %s37 = sadd.s32 1, %s32
      %p38 = scmp.ge.s32.totalorder %s37, 1
      %s39 = scalar_select %p38, 0, %s37
      %s40 = sadd.s32 1, %s31
      %s41 = scalar_select %p38, %s40, %s31
      %p42 = scmp.ge.s32.totalorder %s41, 2
      %s43 = scalar_select %p42, 0, %s41
      %s44 = ssub.s32 %s31, %s43
      %s45 = ssub.s32 %s32, %s39
      %s46 = sor.u32 %s44, %s45
      %p47 = scmp.eq.s32.totalorder %s46, 0
      %s49 = sadd.s32 %s48, 1
      %s50 = scalar_select %p47, %s48, %s49
      %p53 = pneg %p47
      %p54 = scmp.eq.s32.totalorder %s24, 1
      %p55 = por %p53, %p54
      %p56 = scmp.ne.s32.totalorder %s48, %s51
      %p57 = scmp.eq.s32.totalorder %s24, 0
      %p58 = por %p56, %p57
      %p59 = scmp.ne.s32.totalorder %s48, %s51
      %p60 = scmp.eq.s32.totalorder %s29, 1
      %p61 = por %p59, %p60
      %p62 = scmp.ne.s32.totalorder %s51, %s52
      %p63 = scmp.eq.s32.totalorder %s29, 0
      %p64 = por %p62, %p63
      %p65 = scmp.ne.s32.totalorder %s51, %s52
      %p66 = scmp.eq.s32.totalorder %s30, 1
      %p67 = por %p65, %p66
      %p69 = scmp.ne.s32.totalorder %s52, %s68
      %p70 = scmp.eq.s32.totalorder %s30, 0
      %p71 = por %p69, %p70
      %s72 = ssub.s32 %s31, %s43
      %p73 = scmp.eq.s32.totalorder %s72, 0
      %s75 = sadd.s32 %s74, 1
      %s76 = scalar_select %p73, %s74, %s75
      %p79 = pneg %p73
      %p80 = scmp.eq.s32.totalorder %s24, 1
      %p81 = por %p79, %p80
      %p82 = scmp.ne.s32.totalorder %s74, %s77
      %p83 = scmp.eq.s32.totalorder %s24, 0
      %p84 = por %p82, %p83
      %p85 = scmp.ne.s32.totalorder %s74, %s77
      %p86 = scmp.eq.s32.totalorder %s29, 1
      %p87 = por %p85, %p86
      %p88 = scmp.ne.s32.totalorder %s77, %s78
      %p89 = scmp.eq.s32.totalorder %s29, 0
      %p90 = por %p88, %p89
      %p91 = scmp.ne.s32.totalorder %s77, %s78
      %p92 = scmp.eq.s32.totalorder %s30, 1
      %p93 = por %p91, %p92
      %p95 = scmp.ne.s32.totalorder %s78, %s94
      %p96 = scmp.eq.s32.totalorder %s30, 0
      %p97 = por %p95, %p96
      %s98 = ssub.s32 %s31, %s43
      %s99 = ssub.s32 %s32, %s39
      %s100 = sor.u32 %s98, %s99
      %p101 = scmp.eq.s32.totalorder %s100, 0
      %s103 = sadd.s32 %s102, 1
      %s104 = scalar_select %p101, %s102, %s103
      %p107 = pneg %p101
      %p108 = scmp.eq.s32.totalorder %s24, 1
      %p109 = por %p107, %p108
      %p110 = scmp.ne.s32.totalorder %s102, %s105
      %p111 = scmp.eq.s32.totalorder %s24, 0
      %p112 = por %p110, %p111
      %p113 = scmp.ne.s32.totalorder %s102, %s105
      %p114 = scmp.eq.s32.totalorder %s29, 1
      %p115 = por %p113, %p114
      %p116 = scmp.ne.s32.totalorder %s105, %s106
      %p117 = scmp.eq.s32.totalorder %s29, 0
      %p118 = por %p116, %p117
      %p119 = scmp.ne.s32.totalorder %s105, %s106
      %p120 = scmp.eq.s32.totalorder %s30, 1
      %p121 = por %p119, %p120
      %p123 = scmp.ne.s32.totalorder %s106, %s122
      %p124 = scmp.eq.s32.totalorder %s30, 0
      %p125 = por %p123, %p124
      %s127 = sadd.s32 %s126, 1
      %p130 = scmp.eq.s32.totalorder %s24, 1
      %p131 = scmp.ne.s32.totalorder %s126, %s128
      %p132 = scmp.eq.s32.totalorder %s24, 0
      %p133 = por %p131, %p132
      %p134 = scmp.ne.s32.totalorder %s126, %s128
      %p135 = scmp.eq.s32.totalorder %s29, 1
      %p136 = por %p134, %p135
      %p137 = scmp.ne.s32.totalorder %s128, %s129
      %p138 = scmp.eq.s32.totalorder %s29, 0
      %p139 = por %p137, %p138
      %p140 = scmp.ne.s32.totalorder %s128, %s129
      %p141 = scmp.eq.s32.totalorder %s30, 1
      %p142 = por %p140, %p141
      %p144 = scmp.ne.s32.totalorder %s129, %s143
      %p145 = scmp.eq.s32.totalorder %s30, 0
      %p146 = por %p144, %p145
      %s148 = sadd.s32 %s147, 1
      %p151 = scmp.eq.s32.totalorder %s24, 1
      %p152 = scmp.ne.s32.totalorder %s147, %s149
      %p153 = scmp.eq.s32.totalorder %s24, 0
      %p154 = por %p152, %p153
      %p155 = scmp.ne.s32.totalorder %s147, %s149
      %p156 = scmp.eq.s32.totalorder %s29, 1
      %p157 = por %p155, %p156
      %p158 = scmp.ne.s32.totalorder %s149, %s150
      %p159 = scmp.eq.s32.totalorder %s29, 0
      %p160 = por %p158, %p159
      %p161 = scmp.ne.s32.totalorder %s149, %s150
      %p162 = scmp.eq.s32.totalorder %s30, 1
      %p163 = por %p161, %p162
      %p165 = scmp.ne.s32.totalorder %s150, %s164
      %p166 = scmp.eq.s32.totalorder %s30, 0
      %p167 = por %p165, %p166
      %s169 = sadd.s32 %s168, 1
      %p172 = scmp.eq.s32.totalorder %s24, 1
      %p173 = scmp.ne.s32.totalorder %s168, %s170
      %p174 = scmp.eq.s32.totalorder %s24, 0
      %p175 = por %p173, %p174
      %p176 = scmp.ne.s32.totalorder %s168, %s170
      %p177 = scmp.eq.s32.totalorder %s29, 1
      %p178 = por %p176, %p177
      %p179 = scmp.ne.s32.totalorder %s170, %s171
      %p180 = scmp.eq.s32.totalorder %s29, 0
      %p181 = por %p179, %p180
      %p182 = scmp.ne.s32.totalorder %s170, %s171
      %p183 = scmp.eq.s32.totalorder %s30, 1
      %p184 = por %p182, %p183
      %p186 = scmp.ne.s32.totalorder %s171, %s185
      %p187 = scmp.eq.s32.totalorder %s30, 0
      %p188 = por %p186, %p187
      %s190 = sadd.s32 %s189, 1
      %p193 = scmp.eq.s32.totalorder %s24, 1
      %p194 = scmp.ne.s32.totalorder %s189, %s191
      %p195 = scmp.eq.s32.totalorder %s24, 0
      %p196 = por %p194, %p195
      %p197 = scmp.ne.s32.totalorder %s189, %s191
      %p198 = scmp.eq.s32.totalorder %s29, 1
      %p199 = por %p197, %p198
      %p200 = scmp.ne.s32.totalorder %s191, %s192
      %p201 = scmp.eq.s32.totalorder %s29, 0
      %p202 = por %p200, %p201
      %p203 = scmp.ne.s32.totalorder %s191, %s192
      %p204 = scmp.eq.s32.totalorder %s30, 1
      %p205 = por %p203, %p204
      %p207 = scmp.ne.s32.totalorder %s192, %s206
      %p208 = scmp.eq.s32.totalorder %s30, 0
      %p209 = por %p207, %p208
      %s210 = ssub.s32 %s31, %s43
      %s211 = ssub.s32 %s32, %s39
      %s212 = sor.u32 %s210, %s211
      %p213 = scmp.eq.s32.totalorder %s212, 0
      %s215 = sadd.s32 %s214, 1
      %s216 = scalar_select %p213, %s214, %s215
      %p219 = pneg %p213
      %p220 = scmp.eq.s32.totalorder %s24, 1
      %p221 = por %p219, %p220
      %p222 = scmp.ne.s32.totalorder %s214, %s217
      %p223 = scmp.eq.s32.totalorder %s24, 0
      %p224 = por %p222, %p223
      %p225 = scmp.ne.s32.totalorder %s214, %s217
      %p226 = scmp.eq.s32.totalorder %s29, 1
      %p227 = por %p225, %p226
      %p228 = scmp.ne.s32.totalorder %s217, %s218
      %p229 = scmp.eq.s32.totalorder %s29, 0
      %p230 = por %p228, %p229
      %p231 = scmp.ne.s32.totalorder %s217, %s218
      %p232 = scmp.eq.s32.totalorder %s30, 1
      %p233 = por %p231, %p232
      %p235 = scmp.ne.s32.totalorder %s218, %s234
      %p236 = scmp.eq.s32.totalorder %s30, 0
      %p237 = por %p235, %p236
      %p238 = scmp.le.s32.totalorder 1, %s24
      %p239 = scmp.lt.s32.totalorder %s24, 3
      %p240 = pnand %p238, %p239
      %p241 = pneg %p240
      // Predicated region
      $region9: #{tpu_custom_call.1} parent=5 // pred_check
        _
      $region10: #{tpu_custom_call.1} parent=5 // pred_check_branch
        %243 = sbr.rel (%p240) target = $region12
      $region11: #{tpu_custom_call.1} parent=5 // pred_region
        %s244 = ssub.s32 %s24, 1
        // Predicated region
        $region13: #{tpu_custom_call.1} parent=11 // pred_check
          %p245 = pneg %p139
        $region14: #{tpu_custom_call.1} parent=11 // pred_check_branch
          %247 = sbr.rel (%p245) target = $region16
        $region15: #{tpu_custom_call.1} parent=11 // pred_region
          %s249 = ssub.s32 1024, 1024
          %250 = vsyncadd [#allocation11], %s249
          %s251 = sshll.u32 [#allocation10], 4
          %s252 = int_to_ptr.vmem [resolvable:$true] %s251
          %257 = dma.hbm_to_vmem [thread:$0]  %s3, 1024, %s252, [#allocation11], 64, 64, 4
        $region16: #{tpu_custom_call.1} parent=11 // pred_fallthru
          _
        // Predicated region
        $region17: #{tpu_custom_call.1} parent=11 // pred_check
          %p258 = pneg %p160
        $region18: #{tpu_custom_call.1} parent=11 // pred_check_branch
          %260 = sbr.rel (%p258) target = $region20
        $region19: #{tpu_custom_call.1} parent=11 // pred_region
          %s262 = ssub.s32 2048, 2048
          %263 = vsyncadd [#allocation11], %s262
          %s264 = sshll.u32 [#allocation12], 4
          %s265 = int_to_ptr.vmem [resolvable:$true] %s264
          %270 = dma.hbm_to_vmem [thread:$0]  %s4, 2048, %s265, [#allocation11], 128, 128, 8
        $region20: #{tpu_custom_call.1} parent=11 // pred_fallthru
          _
        // Predicated region
        $region21: #{tpu_custom_call.1} parent=11 // pred_check
          %p271 = pneg %p181
        $region22: #{tpu_custom_call.1} parent=11 // pred_check_branch
          %273 = sbr.rel (%p271) target = $region24
        $region23: #{tpu_custom_call.1} parent=11 // pred_region
          %s275 = ssub.s32 1024, 1024
          %276 = vsyncadd [#allocation14], %s275
          %s277 = sshll.u32 [#allocation13], 4
          %s278 = int_to_ptr.vmem [resolvable:$true] %s277
          %283 = dma.hbm_to_vmem [thread:$0]  %s5, 1024, %s278, [#allocation14], 64, 64, 4
        $region24: #{tpu_custom_call.1} parent=11 // pred_fallthru
          _
        // Predicated region
        $region25: #{tpu_custom_call.1} parent=11 // pred_check
          %p284 = pneg %p202
        $region26: #{tpu_custom_call.1} parent=11 // pred_check_branch
          %286 = sbr.rel (%p284) target = $region28
        $region27: #{tpu_custom_call.1} parent=11 // pred_region
          %s288 = ssub.s32 16, 16
          %289 = vsyncadd [#allocation14], %s288
          %s291 = sshll.u32 [#allocation15], 4
          %s292 = int_to_ptr.vmem [resolvable:$true] %s291
          %294 = dma.hbm_to_vmem [thread:$0]  %s6, 16, %s292, [#allocation14]
        $region28: #{tpu_custom_call.1} parent=11 // pred_fallthru
          _
      $region12: #{tpu_custom_call.1} parent=5 // pred_fallthru
        _
      %p295 = scmp.lt.s32.totalorder %s24, 2
      // Predicated region
      $region29: #{tpu_custom_call.1} parent=5 // pred_check
        %p296 = pneg %p295
      $region30: #{tpu_custom_call.1} parent=5 // pred_check_branch
        %298 = sbr.rel (%p296) target = $region32
      $region31: #{tpu_custom_call.1} parent=5 // pred_region
        // Predicated region
        $region33: #{tpu_custom_call.1} parent=31 // pred_check
          %p299 = pneg %p58
        $region34: #{tpu_custom_call.1} parent=31 // pred_check_branch
          %301 = sbr.rel (%p299) target = $region36
        $region35: #{tpu_custom_call.1} parent=31 // pred_region
          %s302 = sand.u32 %s48, 1
          %s303 = scalar_lea.sflag [#allocation5], %s302
          %s304 = sand.u32 %s48, 1
          %s305 = smul.addr %s304, 64
          %s306 = scalar_lea.vmem [#allocation4], %s305
          %s307 = smul.u32 16, %s32
          %s309 = ssub.s32 1024, 1024
          %310 = vsyncadd %s303, %s309
          %s311 = smul.addr %s31, 16
          %s312 = sadd.s32 %s307, %s311
          %s313 = smul.addr %s312, 64
          %s314 = scalar_lea.hbm %s0, %s313
          %s315 = sshll.u32 %s306, 4
          %s316 = int_to_ptr.vmem [resolvable:$true] %s315
          %321 = dma.hbm_to_vmem [thread:$0]  %s314, 1024, %s316, %s303, 64, 64, 4
        $region36: #{tpu_custom_call.1} parent=31 // pred_fallthru
          _
        // Predicated region
        $region37: #{tpu_custom_call.1} parent=31 // pred_check
          %p322 = pneg %p84
        $region38: #{tpu_custom_call.1} parent=31 // pred_check_branch
          %324 = sbr.rel (%p322) target = $region40
        $region39: #{tpu_custom_call.1} parent=31 // pred_region
          %s325 = sand.u32 %s24, 1
          %s326 = scalar_lea.sflag [#allocation8], %s325
          %s327 = sand.u32 %s74, 1
          %s328 = smul.addr %s327, 32
          %s329 = scalar_lea.vmem [#allocation7], %s328
          %s331 = ssub.s32 512, 512
          %332 = vsyncadd %s326, %s331
          %s333 = smul.addr %s31, 8
          %s334 = smul.addr %s333, 64
          %s335 = scalar_lea.hbm %s1, %s334
          %s336 = sshll.u32 %s329, 4
          %s337 = int_to_ptr.vmem [resolvable:$true] %s336
          %342 = dma.hbm_to_vmem [thread:$0]  %s335, 512, %s337, %s326, 64, 64, 4
        $region40: #{tpu_custom_call.1} parent=31 // pred_fallthru
          _
        // Predicated region
        $region41: #{tpu_custom_call.1} parent=31 // pred_check
          %p343 = pneg %p112
        $region42: #{tpu_custom_call.1} parent=31 // pred_check_branch
          %345 = sbr.rel (%p343) target = $region44
        $region43: #{tpu_custom_call.1} parent=31 // pred_region
          %s346 = sand.u32 %s24, 1
          %s347 = scalar_lea.sflag [#allocation8], %s346
          %s348 = sand.u32 %s102, 1
          %s349 = smul.addr %s348, 128
          %s350 = scalar_lea.vmem [#allocation9], %s349
          %s351 = smul.u32 16, %s32
          %s353 = ssub.s32 2048, 2048
          %354 = vsyncadd %s347, %s353
          %s355 = smul.addr %s31, 16
          %s356 = sadd.s32 %s351, %s355
          %s357 = smul.addr %s356, 128
          %s358 = scalar_lea.hbm %s2, %s357
          %s359 = sshll.u32 %s350, 4
          %s360 = int_to_ptr.vmem [resolvable:$true] %s359
          %365 = dma.hbm_to_vmem [thread:$0]  %s358, 2048, %s360, %s347, 128, 128, 8
        $region44: #{tpu_custom_call.1} parent=31 // pred_fallthru
          _
      $region32: #{tpu_custom_call.1} parent=5 // pred_fallthru
        _
      %p366 = scmp.le.s32.totalorder 1, %s24
      %p367 = scmp.lt.s32.totalorder %s24, 3
      %p368 = pnand %p366, %p367
      %p369 = pneg %p368
      // Predicated region
      $region45: #{tpu_custom_call.1} parent=5 // pred_check
        _
      $region46: #{tpu_custom_call.1} parent=5 // pred_check_branch
        %371 = sbr.rel (%p368) target = $region48
      $region47: #{tpu_custom_call.1} parent=5 // pred_region
        %s372 = ssub.s32 %s24, 1
        %s373 = sand.u32 %s51, 1
        %s374 = scalar_lea.sflag [#allocation5], %s373
        %s375 = sand.u32 %s51, 1
        %s376 = smul.addr %s375, 64
        %s377 = scalar_lea.vmem [#allocation4], %s376
        // Predicated region
        $region49: #{tpu_custom_call.1} parent=47 // pred_check
          %p378 = pneg %p64
        $region50: #{tpu_custom_call.1} parent=47 // pred_check_branch
          %380 = sbr.rel (%p378) target = $region52
        $region51: #{tpu_custom_call.1} parent=47 // pred_region
          %381 = dma.done %s374, 1024
        $region52: #{tpu_custom_call.1} parent=47 // pred_fallthru
          _
        %s382 = sand.u32 %s29, 1
        %s383 = scalar_lea.sflag [#allocation8], %s382
        %s384 = sand.u32 %s77, 1
        %s385 = smul.addr %s384, 32
        %s386 = scalar_lea.vmem [#allocation7], %s385
        // Predicated region
        $region53: #{tpu_custom_call.1} parent=47 // pred_check
          %p387 = pneg %p90
        $region54: #{tpu_custom_call.1} parent=47 // pred_check_branch
          %389 = sbr.rel (%p387) target = $region56
        $region55: #{tpu_custom_call.1} parent=47 // pred_region
          %390 = dma.done %s383, 512
        $region56: #{tpu_custom_call.1} parent=47 // pred_fallthru
          _
        %s391 = sand.u32 %s29, 1
        %s392 = scalar_lea.sflag [#allocation8], %s391
        %s393 = sand.u32 %s105, 1
        %s394 = smul.addr %s393, 128
        %s395 = scalar_lea.vmem [#allocation9], %s394
        // Predicated region
        $region57: #{tpu_custom_call.1} parent=47 // pred_check
          %p396 = pneg %p118
        $region58: #{tpu_custom_call.1} parent=47 // pred_check_branch
          %398 = sbr.rel (%p396) target = $region60
        $region59: #{tpu_custom_call.1} parent=47 // pred_region
          %399 = dma.done %s392, 2048
        $region60: #{tpu_custom_call.1} parent=47 // pred_fallthru
          _
        // Predicated region
        $region61: #{tpu_custom_call.1} parent=47 // pred_check
          %p400 = pneg %p139
        $region62: #{tpu_custom_call.1} parent=47 // pred_check_branch
          %402 = sbr.rel (%p400) target = $region64
        $region63: #{tpu_custom_call.1} parent=47 // pred_region
          %403 = dma.done [#allocation11], 1024
        $region64: #{tpu_custom_call.1} parent=47 // pred_fallthru
          _
        // Predicated region
        $region65: #{tpu_custom_call.1} parent=47 // pred_check
          %p404 = pneg %p160
        $region66: #{tpu_custom_call.1} parent=47 // pred_check_branch
          %406 = sbr.rel (%p404) target = $region68
        $region67: #{tpu_custom_call.1} parent=47 // pred_region
          %407 = dma.done [#allocation11], 2048
        $region68: #{tpu_custom_call.1} parent=47 // pred_fallthru
          _
        // Predicated region
        $region69: #{tpu_custom_call.1} parent=47 // pred_check
          %p408 = pneg %p181
        $region70: #{tpu_custom_call.1} parent=47 // pred_check_branch
          %410 = sbr.rel (%p408) target = $region72
        $region71: #{tpu_custom_call.1} parent=47 // pred_region
          %411 = dma.done [#allocation14], 1024
        $region72: #{tpu_custom_call.1} parent=47 // pred_fallthru
          _
        // Predicated region
        $region73: #{tpu_custom_call.1} parent=47 // pred_check
          %p412 = pneg %p202
        $region74: #{tpu_custom_call.1} parent=47 // pred_check_branch
          %414 = sbr.rel (%p412) target = $region76
        $region75: #{tpu_custom_call.1} parent=47 // pred_region
          %415 = dma.done [#allocation14], 16
        $region76: #{tpu_custom_call.1} parent=47 // pred_fallthru
          _
        %s416 = sand.u32 %s51, 1
        %s417 = scalar_lea.sflag [#allocation5], %s416
        %s418 = sand.u32 %s51, 1
        %s419 = smul.addr %s418, 64
        %s420 = scalar_lea.vmem [#allocation4], %s419
        %p421 = pneg %p64
        %p422 = pneg %p61
        %s423 = sand.u32 %s29, 1
        %s424 = scalar_lea.sflag [#allocation8], %s423
        %s425 = sand.u32 %s77, 1
        %s426 = smul.addr %s425, 32
        %s427 = scalar_lea.vmem [#allocation7], %s426
        %p428 = pneg %p90
        %p429 = pneg %p87
        %s430 = sand.u32 %s29, 1
        %s431 = scalar_lea.sflag [#allocation8], %s430
        %s432 = sand.u32 %s105, 1
        %s433 = smul.addr %s432, 128
        %s434 = scalar_lea.vmem [#allocation9], %s433
        %p435 = pneg %p118
        %p436 = pneg %p115
        %p437 = pneg %p139
        %p438 = pneg %p136
        %p439 = pneg %p160
        %p440 = pneg %p157
        %p441 = pneg %p181
        %p442 = pneg %p178
        %p443 = pneg %p202
        %p444 = pneg %p199
        %p445 = pneg %p230
        %p446 = pneg %p227
        %s447 = sand.u32 %s217, 1
        %s448 = scalar_lea.sflag [#allocation6], %s447
        %s449 = sand.u32 %s217, 1
        %s450 = smul.addr %s449, 128
        %s451 = scalar_lea.vmem [#allocation16], %s450
        %s452 = smul.u32 16, %s34
        %s453 = smul.u32 16, %s34
        %s454 = smul.u32 16, %s34
        %p456 = scmp.eq.s32.totalorder %s34, 0
        // Predicated region
        $region77: #{tpu_custom_call.1} parent=47 // pred_check
          %p457 = pneg %p456
        $region78: #{tpu_custom_call.1} parent=47 // pred_check_branch
          %459 = sbr.rel (%p457) target = $region80
        $region79: #{tpu_custom_call.1} parent=47 // pred_region
          %v460 = vld [vmem:[%s386] sm:$0xf]
          %v461 = vld [vmem:[%s386 + $0x4] sm:$0xf]
          %v462 = vld [vmem:[%s386 + $0x8] sm:$0xf]
          %v463 = vld [vmem:[%s386 + $0xc] sm:$0xf]
          %v464 = vld [vmem:[%s386 + $0x10] sm:$0xf]
          %v465 = vld [vmem:[%s386 + $0x14] sm:$0xf]
          %v466 = vld [vmem:[%s386 + $0x18] sm:$0xf]
          %v467 = vld [vmem:[%s386 + $0x1c] sm:$0xf]
          %v468 = vld [vmem:[#allocation12] sm:$0xff]
          %v469 = vld [vmem:[#allocation12 + $0x8] sm:$0xff]
          %v470 = vld [vmem:[#allocation12 + $0x10] sm:$0xff]
          %v471 = vld [vmem:[#allocation12 + $0x18] sm:$0xff]
          %v472 = vld [vmem:[#allocation12 + $0x20] sm:$0xff]
          %v473 = vld [vmem:[#allocation12 + $0x28] sm:$0xff]
          %v474 = vld [vmem:[#allocation12 + $0x30] sm:$0xff]
          %v475 = vld [vmem:[#allocation12 + $0x38] sm:$0xff]
          %v476 = vld [vmem:[#allocation12 + $0x40] sm:$0xff]
          %v477 = vld [vmem:[#allocation12 + $0x48] sm:$0xff]
          %v478 = vld [vmem:[#allocation12 + $0x50] sm:$0xff]
          %v479 = vld [vmem:[#allocation12 + $0x58] sm:$0xff]
          %v480 = vld [vmem:[#allocation12 + $0x60] sm:$0xff]
          %v481 = vld [vmem:[#allocation12 + $0x68] sm:$0xff]
          %v482 = vld [vmem:[#allocation12 + $0x70] sm:$0xff]
          %v483 = vld [vmem:[#allocation12 + $0x78] sm:$0xff]
          %v492 = vunpack.c.l.b16 %v460
          %v493 = vunpack.c.l.b16 %v461
          %v494 = vunpack.c.l.b16 %v462
          %v495 = vunpack.c.l.b16 %v463
          %v496 = vunpack.c.l.b16 %v464
          %v497 = vunpack.c.l.b16 %v465
          %v498 = vunpack.c.l.b16 %v466
          %v499 = vunpack.c.l.b16 %v467
          %v500 = vpack.c.b16 %v493, %v492
          %v501 = vpack.c.b16 %v495, %v494
          %v502 = vpack.c.b16 %v497, %v496
          %v503 = vpack.c.b16 %v499, %v498
          %v524 = vunpack.c.l.b16 %v468
          %v525 = vunpack.c.h.b16 %v468
          %v526 = vunpack.c.l.b16 %v469
          %v527 = vunpack.c.h.b16 %v469
          %v528 = vunpack.c.l.b16 %v470
          %v529 = vunpack.c.h.b16 %v470
          %v530 = vunpack.c.l.b16 %v471
          %v531 = vunpack.c.h.b16 %v471
          %v532 = vunpack.c.l.b16 %v472
          %v533 = vunpack.c.h.b16 %v472
          %v534 = vunpack.c.l.b16 %v473
          %v535 = vunpack.c.h.b16 %v473
          %v536 = vunpack.c.l.b16 %v474
          %v537 = vunpack.c.h.b16 %v474
          %v538 = vunpack.c.l.b16 %v475
          %v539 = vunpack.c.h.b16 %v475
          %v540 = vunpack.c.l.b16 %v476
          %v541 = vunpack.c.h.b16 %v476
          %v542 = vunpack.c.l.b16 %v477
          %v543 = vunpack.c.h.b16 %v477
          %v544 = vunpack.c.l.b16 %v478
          %v545 = vunpack.c.h.b16 %v478
          %v546 = vunpack.c.l.b16 %v479
          %v547 = vunpack.c.h.b16 %v479
          %v548 = vunpack.c.l.b16 %v480
          %v549 = vunpack.c.h.b16 %v480
          %v550 = vunpack.c.l.b16 %v481
          %v551 = vunpack.c.h.b16 %v481
          %v552 = vunpack.c.l.b16 %v482
          %v553 = vunpack.c.h.b16 %v482
          %v554 = vunpack.c.l.b16 %v483
          %v555 = vunpack.c.h.b16 %v483
          %v556 = vpack.c.b16 %v526, %v524
          %v557 = vpack.c.b16 %v527, %v525
          %v558 = vpack.c.b16 %v530, %v528
          %v559 = vpack.c.b16 %v531, %v529
          %v560 = vpack.c.b16 %v534, %v532
          %v561 = vpack.c.b16 %v535, %v533
          %v562 = vpack.c.b16 %v538, %v536
          %v563 = vpack.c.b16 %v539, %v537
          %v564 = vpack.c.b16 %v542, %v540
          %v565 = vpack.c.b16 %v543, %v541
          %v566 = vpack.c.b16 %v546, %v544
          %v567 = vpack.c.b16 %v547, %v545
          %v568 = vpack.c.b16 %v550, %v548
          %v569 = vpack.c.b16 %v551, %v549
          %v570 = vpack.c.b16 %v554, %v552
          %v571 = vpack.c.b16 %v555, %v553
          %588 = vmatprep.subr.bf16.mxu0 %v557
          %589 = vmatpush1.bf16.msra.mxu0 %v556
          %590 = vmatprep.subr.bf16.mxu0 %v559
          %591 = vmatpush1.bf16.msra.mxu0 %v558
          %592 = vmatprep.subr.bf16.mxu0 %v561
          %593 = vmatpush1.bf16.msra.mxu0 %v560
          %594 = vmatprep.subr.bf16.mxu0 %v563
          %595 = vmatpush1.bf16.msra.mxu0 %v562
          %596 = vmatprep.subr.bf16.mxu0 %v565
          %597 = vmatpush1.bf16.msra.mxu0 %v564
          %598 = vmatprep.subr.bf16.mxu0 %v567
          %599 = vmatpush1.bf16.msra.mxu0 %v566
          %600 = vmatprep.subr.bf16.mxu0 %v569
          %601 = vmatpush1.bf16.msra.mxu0 %v568
          %602 = vmatprep.subr.bf16.mxu0 %v571
          %603 = vmatpush1.bf16.msra.mxu0 %v570
          %604 = vmatprep.subr.bf16.mxu0 0
          %605 = vmatpush1.bf16.msra.mxu0 0
          %606 = vmatprep.subr.bf16.mxu0 0
          %607 = vmatpush1.bf16.msra.mxu0 0
          %608 = vmatprep.subr.bf16.mxu0 0
          %609 = vmatpush1.bf16.msra.mxu0 0
          %610 = vmatprep.subr.bf16.mxu0 0
          %611 = vmatpush1.bf16.msra.mxu0 0
          %612 = vmatprep.subr.bf16.mxu0 0
          %613 = vmatpush1.bf16.msra.mxu0 0
          %614 = vmatprep.subr.bf16.mxu0 0
          %615 = vmatpush1.bf16.msra.mxu0 0
          %616 = vmatprep.subr.bf16.mxu0 0
          %617 = vmatpush1.bf16.msra.mxu0 0
          %618 = vmatprep.subr.bf16.mxu0 0
          %619 = vmatpush1.bf16.msra.mxu0 0
          %620 = vmatprep.mubr.bf16.mxu0 0
          %621 = vmatmul.mubr.bf16.gmra.mrb[0].mxu0 %v500
          %v622 = vpop.f32.mrb[0].mxu0
          %v623 = vadd.f32 0.0, %v622
          %v624 = vpop.f32.mrb[0].mxu0
          %v625 = vadd.f32 0.0, %v624
          %v626 = vpop.f32.mrb[0].mxu0
          %v627 = vadd.f32 0.0, %v626
          %v628 = vpop.f32.mrb[0].mxu0
          %v629 = vadd.f32 0.0, %v628
          %630 = vmatprep.mubr.bf16.mxu0 0
          %631 = vmatmul.mubr.bf16.gmra.mrb[0].mxu0 %v501
          %v632 = vpop.f32.mrb[0].mxu0
          %v633 = vadd.f32 0.0, %v632
          %v634 = vpop.f32.mrb[0].mxu0
          %v635 = vadd.f32 0.0, %v634
          %v636 = vpop.f32.mrb[0].mxu0
          %v637 = vadd.f32 0.0, %v636
          %v638 = vpop.f32.mrb[0].mxu0
          %v639 = vadd.f32 0.0, %v638
          %640 = vmatprep.mubr.bf16.mxu0 0
          %641 = vmatmul.mubr.bf16.gmra.mrb[0].mxu0 %v502
          %v642 = vpop.f32.mrb[0].mxu0
          %v643 = vadd.f32 0.0, %v642
          %v644 = vpop.f32.mrb[0].mxu0
          %v645 = vadd.f32 0.0, %v644
          %v646 = vpop.f32.mrb[0].mxu0
          %v647 = vadd.f32 0.0, %v646
          %v648 = vpop.f32.mrb[0].mxu0
          %v649 = vadd.f32 0.0, %v648
          %650 = vmatprep.mubr.bf16.mxu0 0
          %651 = vmatmul.mubr.bf16.gmra.mrb[0].mxu0 %v503
          %v652 = vpop.f32.mrb[0].mxu0
          %v653 = vadd.f32 0.0, %v652
          %v654 = vpop.f32.mrb[0].mxu0
          %v655 = vadd.f32 0.0, %v654
          %v656 = vpop.f32.mrb[0].mxu0
          %v657 = vadd.f32 0.0, %v656
          %v658 = vpop.f32.mrb[0].mxu0
          %v659 = vadd.f32 0.0, %v658
          %660 = vdwg.mxu0
          %v661 = vpack.c.bf16 %v627, %v623
          %v662 = vpack.c.bf16 %v629, %v625
          %v663 = vpack.c.bf16 %v637, %v633
          %v664 = vpack.c.bf16 %v639, %v635
          %v665 = vpack.c.bf16 %v647, %v643
          %v666 = vpack.c.bf16 %v649, %v645
          %v667 = vpack.c.bf16 %v657, %v653
          %v668 = vpack.c.bf16 %v659, %v655
          %669 = vst [vmem:[#allocation2] sm:$0xff] %v661
          %670 = vst [vmem:[#allocation2 + $0x8] sm:$0xff] %v662
          %671 = vst [vmem:[#allocation2 + $0x10] sm:$0xff] %v663
          %672 = vst [vmem:[#allocation2 + $0x18] sm:$0xff] %v664
          %673 = vst [vmem:[#allocation2 + $0x20] sm:$0xff] %v665
          %674 = vst [vmem:[#allocation2 + $0x28] sm:$0xff] %v666
          %675 = vst [vmem:[#allocation2 + $0x30] sm:$0xff] %v667
          %676 = vst [vmem:[#allocation2 + $0x38] sm:$0xff] %v668
        $region80: #{tpu_custom_call.1} parent=47 // pred_fallthru
          _
        %v677 = vld [vmem:[%s377] sm:$0xf]
        %v678 = vld [vmem:[%s377 + $0x4] sm:$0xf]
        %v679 = vld [vmem:[%s377 + $0x8] sm:$0xf]
        %v680 = vld [vmem:[%s377 + $0xc] sm:$0xf]
        %v681 = vld [vmem:[%s377 + $0x10] sm:$0xf]
        %v682 = vld [vmem:[%s377 + $0x14] sm:$0xf]
        %v683 = vld [vmem:[%s377 + $0x18] sm:$0xf]
        %v684 = vld [vmem:[%s377 + $0x1c] sm:$0xf]
        %v685 = vld [vmem:[%s377 + $0x20] sm:$0xf]
        %v686 = vld [vmem:[%s377 + $0x24] sm:$0xf]
        %v687 = vld [vmem:[%s377 + $0x28] sm:$0xf]
        %v688 = vld [vmem:[%s377 + $0x2c] sm:$0xf]
        %v689 = vld [vmem:[%s377 + $0x30] sm:$0xf]
        %v690 = vld [vmem:[%s377 + $0x34] sm:$0xf]
        %v691 = vld [vmem:[%s377 + $0x38] sm:$0xf]
        %v692 = vld [vmem:[%s377 + $0x3c] sm:$0xf]
        %v693 = vld [vmem:[%s395] sm:$0xff]
        %v694 = vld [vmem:[%s395 + $0x8] sm:$0xff]
        %v695 = vld [vmem:[%s395 + $0x10] sm:$0xff]
        %v696 = vld [vmem:[%s395 + $0x18] sm:$0xff]
        %v697 = vld [vmem:[%s395 + $0x20] sm:$0xff]
        %v698 = vld [vmem:[%s395 + $0x28] sm:$0xff]
        %v699 = vld [vmem:[%s395 + $0x30] sm:$0xff]
        %v700 = vld [vmem:[%s395 + $0x38] sm:$0xff]
        %v701 = vld [vmem:[%s395 + $0x40] sm:$0xff]
        %v702 = vld [vmem:[%s395 + $0x48] sm:$0xff]
        %v703 = vld [vmem:[%s395 + $0x50] sm:$0xff]
        %v704 = vld [vmem:[%s395 + $0x58] sm:$0xff]
        %v705 = vld [vmem:[%s395 + $0x60] sm:$0xff]
        %v706 = vld [vmem:[%s395 + $0x68] sm:$0xff]
        %v707 = vld [vmem:[%s395 + $0x70] sm:$0xff]
        %v708 = vld [vmem:[%s395 + $0x78] sm:$0xff]
        %v709 = vld [vmem:[#allocation10] sm:$0xf]
        %v710 = vld [vmem:[#allocation10 + $0x4] sm:$0xf]
        %v711 = vld [vmem:[#allocation10 + $0x8] sm:$0xf]
        %v712 = vld [vmem:[#allocation10 + $0xc] sm:$0xf]
        %v713 = vld [vmem:[#allocation10 + $0x10] sm:$0xf]
        %v714 = vld [vmem:[#allocation10 + $0x14] sm:$0xf]
        %v715 = vld [vmem:[#allocation10 + $0x18] sm:$0xf]
        %v716 = vld [vmem:[#allocation10 + $0x1c] sm:$0xf]
        %v717 = vld [vmem:[#allocation10 + $0x20] sm:$0xf]
        %v718 = vld [vmem:[#allocation10 + $0x24] sm:$0xf]
        %v719 = vld [vmem:[#allocation10 + $0x28] sm:$0xf]
        %v720 = vld [vmem:[#allocation10 + $0x2c] sm:$0xf]
        %v721 = vld [vmem:[#allocation10 + $0x30] sm:$0xf]
        %v722 = vld [vmem:[#allocation10 + $0x34] sm:$0xf]
        %v723 = vld [vmem:[#allocation10 + $0x38] sm:$0xf]
        %v724 = vld [vmem:[#allocation10 + $0x3c] sm:$0xf]
        %v741 = vunpack.c.l.b16 %v677
        %v742 = vunpack.c.l.b16 %v678
        %v743 = vunpack.c.l.b16 %v679
        %v744 = vunpack.c.l.b16 %v680
        %v745 = vunpack.c.l.b16 %v681
        %v746 = vunpack.c.l.b16 %v682
        %v747 = vunpack.c.l.b16 %v683
        %v748 = vunpack.c.l.b16 %v684
        %v749 = vunpack.c.l.b16 %v685
        %v750 = vunpack.c.l.b16 %v686
        %v751 = vunpack.c.l.b16 %v687
        %v752 = vunpack.c.l.b16 %v688
        %v753 = vunpack.c.l.b16 %v689
        %v754 = vunpack.c.l.b16 %v690
        %v755 = vunpack.c.l.b16 %v691
        %v756 = vunpack.c.l.b16 %v692
        %v757 = vpack.c.b16 %v742, %v741
        %v758 = vpack.c.b16 %v744, %v743
        %v759 = vpack.c.b16 %v746, %v745
        %v760 = vpack.c.b16 %v748, %v747
        %v761 = vpack.c.b16 %v750, %v749
        %v762 = vpack.c.b16 %v752, %v751
        %v763 = vpack.c.b16 %v754, %v753
        %v764 = vpack.c.b16 %v756, %v755
        %v789 = vunpack.c.l.b16 %v709
        %v790 = vunpack.c.l.b16 %v710
        %v791 = vunpack.c.l.b16 %v711
        %v792 = vunpack.c.l.b16 %v712
        %v793 = vunpack.c.l.b16 %v713
        %v794 = vunpack.c.l.b16 %v714
        %v795 = vunpack.c.l.b16 %v715
        %v796 = vunpack.c.l.b16 %v716
        %v797 = vunpack.c.l.b16 %v717
        %v798 = vunpack.c.l.b16 %v718
        %v799 = vunpack.c.l.b16 %v719
        %v800 = vunpack.c.l.b16 %v720
        %v801 = vunpack.c.l.b16 %v721
        %v802 = vunpack.c.l.b16 %v722
        %v803 = vunpack.c.l.b16 %v723
        %v804 = vunpack.c.l.b16 %v724
        %v805 = vpack.c.b16 %v790, %v789
        %v806 = vpack.c.b16 %v792, %v791
        %v807 = vpack.c.b16 %v794, %v793
        %v808 = vpack.c.b16 %v796, %v795
        %v809 = vpack.c.b16 %v798, %v797
        %v810 = vpack.c.b16 %v800, %v799
        %v811 = vpack.c.b16 %v802, %v801
        %v812 = vpack.c.b16 %v804, %v803
        %821 = vmatprep.subr.bf16.mxu0 0
        %822 = vmatpush1.bf16.msra.mxu0 %v805
        %823 = vmatprep.subr.bf16.mxu0 0
        %824 = vmatpush1.bf16.msra.mxu0 %v806
        %825 = vmatprep.subr.bf16.mxu0 0
        %826 = vmatpush1.bf16.msra.mxu0 %v807
        %827 = vmatprep.subr.bf16.mxu0 0
        %828 = vmatpush1.bf16.msra.mxu0 %v808
        %829 = vmatprep.subr.bf16.mxu0 0
        %830 = vmatpush1.bf16.msra.mxu0 %v809
        %831 = vmatprep.subr.bf16.mxu0 0
        %832 = vmatpush1.bf16.msra.mxu0 %v810
        %833 = vmatprep.subr.bf16.mxu0 0
        %834 = vmatpush1.bf16.msra.mxu0 %v811
        %835 = vmatprep.subr.bf16.mxu0 0
        %836 = vmatpush1.bf16.msra.mxu0 %v812
        %837 = vmatprep.subr.bf16.mxu0 0
        %838 = vmatpush1.bf16.msra.mxu0 0
        %839 = vmatprep.subr.bf16.mxu0 0
        %840 = vmatpush1.bf16.msra.mxu0 0
        %841 = vmatprep.subr.bf16.mxu0 0
        %842 = vmatpush1.bf16.msra.mxu0 0
        %843 = vmatprep.subr.bf16.mxu0 0
        %844 = vmatpush1.bf16.msra.mxu0 0
        %845 = vmatprep.subr.bf16.mxu0 0
        %846 = vmatpush1.bf16.msra.mxu0 0
        %847 = vmatprep.subr.bf16.mxu0 0
        %848 = vmatpush1.bf16.msra.mxu0 0
        %849 = vmatprep.subr.bf16.mxu0 0
        %850 = vmatpush1.bf16.msra.mxu0 0
        %851 = vmatprep.subr.bf16.mxu0 0
        %852 = vmatpush1.bf16.msra.mxu0 0
        %853 = vmatprep.mubr.bf16.mxu0 0
        %854 = vmatmul.mubr.bf16.gmra.mrb[0].mxu0 %v757
        %v855 = vpop.f32.mrb[0].mxu0
        %v856 = vadd.f32 0.0, %v855
        %v857 = vpop.f32.mrb[0].mxu0
        %v858 = vpop.f32.mrb[0].mxu0
        %v859 = vadd.f32 0.0, %v858
        %v860 = vpop.f32.mrb[0].mxu0
        %861 = vmatprep.mubr.bf16.mxu0 0
        %862 = vmatmul.mubr.bf16.gmra.mrb[0].mxu0 %v758
        %v863 = vpop.f32.mrb[0].mxu0
        %v864 = vadd.f32 0.0, %v863
        %v865 = vpop.f32.mrb[0].mxu0
        %v866 = vpop.f32.mrb[0].mxu0
        %v867 = vadd.f32 0.0, %v866
        %v868 = vpop.f32.mrb[0].mxu0
        %869 = vmatprep.mubr.bf16.mxu0 0
        %870 = vmatmul.mubr.bf16.gmra.mrb[0].mxu0 %v759
        %v871 = vpop.f32.mrb[0].mxu0
        %v872 = vadd.f32 0.0, %v871
        %v873 = vpop.f32.mrb[0].mxu0
        %v874 = vpop.f32.mrb[0].mxu0
        %v875 = vadd.f32 0.0, %v874
        %v876 = vpop.f32.mrb[0].mxu0
        %877 = vmatprep.mubr.bf16.mxu0 0
        %878 = vmatmul.mubr.bf16.gmra.mrb[0].mxu0 %v760
        %v879 = vpop.f32.mrb[0].mxu0
        %v880 = vadd.f32 0.0, %v879
        %v881 = vpop.f32.mrb[0].mxu0
        %v882 = vpop.f32.mrb[0].mxu0
        %v883 = vadd.f32 0.0, %v882
        %v884 = vpop.f32.mrb[0].mxu0
        %885 = vmatprep.mubr.bf16.mxu0 0
        %886 = vmatmul.mubr.bf16.gmra.mrb[0].mxu0 %v761
        %v887 = vpop.f32.mrb[0].mxu0
        %v888 = vadd.f32 0.0, %v887
        %v889 = vpop.f32.mrb[0].mxu0
        %v890 = vpop.f32.mrb[0].mxu0
        %v891 = vadd.f32 0.0, %v890
        %v892 = vpop.f32.mrb[0].mxu0
        %893 = vmatprep.mubr.bf16.mxu0 0
        %894 = vmatmul.mubr.bf16.gmra.mrb[0].mxu0 %v762
        %v895 = vpop.f32.mrb[0].mxu0
        %v896 = vadd.f32 0.0, %v895
        %v897 = vpop.f32.mrb[0].mxu0
        %v898 = vpop.f32.mrb[0].mxu0
        %v899 = vadd.f32 0.0, %v898
        %v900 = vpop.f32.mrb[0].mxu0
        %901 = vmatprep.mubr.bf16.mxu0 0
        %902 = vmatmul.mubr.bf16.gmra.mrb[0].mxu0 %v763
        %v903 = vpop.f32.mrb[0].mxu0
        %v904 = vadd.f32 0.0, %v903
        %v905 = vpop.f32.mrb[0].mxu0
        %v906 = vpop.f32.mrb[0].mxu0
        %v907 = vadd.f32 0.0, %v906
        %v908 = vpop.f32.mrb[0].mxu0
        %909 = vmatprep.mubr.bf16.mxu0 0
        %910 = vmatmul.mubr.bf16.gmra.mrb[0].mxu0 %v764
        %v911 = vpop.f32.mrb[0].mxu0
        %v912 = vadd.f32 0.0, %v911
        %v913 = vpop.f32.mrb[0].mxu0
        %v914 = vpop.f32.mrb[0].mxu0
        %v915 = vadd.f32 0.0, %v914
        %v916 = vpop.f32.mrb[0].mxu0
        %917 = vdwg.mxu0
        %v918 = vpack.c.bf16 %v859, %v856
        %v919 = vpack.c.bf16 %v867, %v864
        %v920 = vpack.c.bf16 %v875, %v872
        %v921 = vpack.c.bf16 %v883, %v880
        %v922 = vpack.c.bf16 %v891, %v888
        %v923 = vpack.c.bf16 %v899, %v896
        %v924 = vpack.c.bf16 %v907, %v904
        %v925 = vpack.c.bf16 %v915, %v912
        %v926 = vld [vmem:[#allocation2] sm:$0xff]
        %v927 = vld [vmem:[#allocation2 + $0x8] sm:$0xff]
        %v928 = vld [vmem:[#allocation2 + $0x10] sm:$0xff]
        %v929 = vld [vmem:[#allocation2 + $0x18] sm:$0xff]
        %v930 = vld [vmem:[#allocation2 + $0x20] sm:$0xff]
        %v931 = vld [vmem:[#allocation2 + $0x28] sm:$0xff]
        %v932 = vld [vmem:[#allocation2 + $0x30] sm:$0xff]
        %v933 = vld [vmem:[#allocation2 + $0x38] sm:$0xff]
        %935 = vset.pattern.permute.xlu0 0
        %936 = vperm.xlu0 %935, %v693
        %v937 = vpop.permute.xlu0 %936
        %940 = vset.pattern.permute.xlu0 0
        %941 = vperm.xlu0 %940, %v694
        %v942 = vpop.permute.xlu0 %941
        %945 = vset.pattern.permute.xlu0 0
        %946 = vperm.xlu0 %945, %v695
        %v947 = vpop.permute.xlu0 %946
        %950 = vset.pattern.permute.xlu0 0
        %951 = vperm.xlu0 %950, %v696
        %v952 = vpop.permute.xlu0 %951
        %955 = vset.pattern.permute.xlu0 0
        %956 = vperm.xlu0 %955, %v697
        %v957 = vpop.permute.xlu0 %956
        %960 = vset.pattern.permute.xlu0 0
        %961 = vperm.xlu0 %960, %v698
        %v962 = vpop.permute.xlu0 %961
        %965 = vset.pattern.permute.xlu0 0
        %966 = vperm.xlu0 %965, %v699
        %v967 = vpop.permute.xlu0 %966
        %970 = vset.pattern.permute.xlu0 0
        %971 = vperm.xlu0 %970, %v700
        %v972 = vpop.permute.xlu0 %971
        %975 = vset.pattern.permute.xlu0 0
        %976 = vperm.xlu0 %975, %v701
        %v977 = vpop.permute.xlu0 %976
        %980 = vset.pattern.permute.xlu0 0
        %981 = vperm.xlu0 %980, %v702
        %v982 = vpop.permute.xlu0 %981
        %985 = vset.pattern.permute.xlu0 0
        %986 = vperm.xlu0 %985, %v703
        %v987 = vpop.permute.xlu0 %986
        %990 = vset.pattern.permute.xlu0 0
        %991 = vperm.xlu0 %990, %v704
        %v992 = vpop.permute.xlu0 %991
        %995 = vset.pattern.permute.xlu0 0
        %996 = vperm.xlu0 %995, %v705
        %v997 = vpop.permute.xlu0 %996
        %1000 = vset.pattern.permute.xlu0 0
        %1001 = vperm.xlu0 %1000, %v706
        %v1002 = vpop.permute.xlu0 %1001
        %1005 = vset.pattern.permute.xlu0 0
        %1006 = vperm.xlu0 %1005, %v707
        %v1007 = vpop.permute.xlu0 %1006
        %1010 = vset.pattern.permute.xlu0 0
        %1011 = vperm.xlu0 %1010, %v708
        %v1012 = vpop.permute.xlu0 %1011
        %vm1014 = vcmask 523264
        %v1016 = vsel %vm1014, %v918, 0
        %v1019 = vsel %vm1014, %v919, 0
        %v1022 = vsel %vm1014, %v920, 0
        %v1025 = vsel %vm1014, %v921, 0
        %v1028 = vsel %vm1014, %v922, 0
        %v1031 = vsel %vm1014, %v923, 0
        %v1034 = vsel %vm1014, %v924, 0
        %v1037 = vsel %vm1014, %v925, 0
        %v1040 = vsel %vm1014, %v926, 0
        %v1043 = vsel %vm1014, %v928, 0
        %v1046 = vsel %vm1014, %v930, 0
        %v1049 = vsel %vm1014, %v932, 0
        %1051 = vmatprep.subr.bf16.mxu0 0
        %1052 = vmatpush1.bf16.xpose.msra.mxu0 %v1040
        %1053 = vmatprep.subr.bf16.mxu0 0
        %1054 = vmatpush1.bf16.xpose.msra.mxu0 %v1043
        %1055 = vmatprep.subr.bf16.mxu0 0
        %1056 = vmatpush1.bf16.xpose.msra.mxu0 %v1046
        %1057 = vmatprep.subr.bf16.mxu0 0
        %1058 = vmatpush1.bf16.xpose.msra.mxu0 %v1049
        %1059 = vmatprep.subr.bf16.mxu0 0
        %1060 = vmatpush1.bf16.xpose.msra.mxu0 0
        %1061 = vmatprep.subr.bf16.mxu0 0
        %1062 = vmatpush1.bf16.xpose.msra.mxu0 0
        %1063 = vmatprep.subr.bf16.mxu0 0
        %1064 = vmatpush1.bf16.xpose.msra.mxu0 0
        %1065 = vmatprep.subr.bf16.mxu0 0
        %1066 = vmatpush1.bf16.xpose.msra.mxu0 0
        %1067 = vmatprep.subr.bf16.mxu0 0
        %1068 = vmatpush1.bf16.xpose.msra.mxu0 0
        %1069 = vmatprep.subr.bf16.mxu0 0
        %1070 = vmatpush1.bf16.xpose.msra.mxu0 0
        %1071 = vmatprep.subr.bf16.mxu0 0
        %1072 = vmatpush1.bf16.xpose.msra.mxu0 0
        %1073 = vmatprep.subr.bf16.mxu0 0
        %1074 = vmatpush1.bf16.xpose.msra.mxu0 0
        %1075 = vmatprep.subr.bf16.mxu0 0
        %1076 = vmatpush1.bf16.xpose.msra.mxu0 0
        %1077 = vmatprep.subr.bf16.mxu0 0
        %1078 = vmatpush1.bf16.xpose.msra.mxu0 0
        %1079 = vmatprep.subr.bf16.mxu0 0
        %1080 = vmatpush1.bf16.xpose.msra.mxu0 0
        %1081 = vmatprep.subr.bf16.mxu0 0
        %1082 = vmatpush1.bf16.xpose.msra.mxu0 0
        %1083 = vmatprep.mubr.bf16.mxu0 0
        %1084 = vmatmul.mubr.bf16.gmra.mrb[0].mxu0 %v1016
        %v1085 = vpop.f32.mrb[0].mxu0
        %v1086 = vadd.f32 %v937, %v1085
        %v1087 = vpop.f32.mrb[0].mxu0
        %v1088 = vpop.f32.mrb[0].mxu0
        %v1089 = vadd.f32 %v942, %v1088
        %v1090 = vpop.f32.mrb[0].mxu0
        %1091 = vmatprep.mubr.bf16.mxu0 0
        %1092 = vmatmul.mubr.bf16.gmra.mrb[0].mxu0 %v1019
        %v1093 = vpop.f32.mrb[0].mxu0
        %v1094 = vadd.f32 %v947, %v1093
        %v1095 = vpop.f32.mrb[0].mxu0
        %v1096 = vpop.f32.mrb[0].mxu0
        %v1097 = vadd.f32 %v952, %v1096
        %v1098 = vpop.f32.mrb[0].mxu0
        %1099 = vmatprep.mubr.bf16.mxu0 0
        %1100 = vmatmul.mubr.bf16.gmra.mrb[0].mxu0 %v1022
        %v1101 = vpop.f32.mrb[0].mxu0
        %v1102 = vadd.f32 %v957, %v1101
        %v1103 = vpop.f32.mrb[0].mxu0
        %v1104 = vpop.f32.mrb[0].mxu0
        %v1105 = vadd.f32 %v962, %v1104
        %v1106 = vpop.f32.mrb[0].mxu0
        %1107 = vmatprep.mubr.bf16.mxu0 0
        %1108 = vmatmul.mubr.bf16.gmra.mrb[0].mxu0 %v1025
        %v1109 = vpop.f32.mrb[0].mxu0
        %v1110 = vadd.f32 %v967, %v1109
        %v1111 = vpop.f32.mrb[0].mxu0
        %v1112 = vpop.f32.mrb[0].mxu0
        %v1113 = vadd.f32 %v972, %v1112
        %v1114 = vpop.f32.mrb[0].mxu0
        %1115 = vmatprep.mubr.bf16.mxu0 0
        %1116 = vmatmul.mubr.bf16.gmra.mrb[0].mxu0 %v1028
        %v1117 = vpop.f32.mrb[0].mxu0
        %v1118 = vadd.f32 %v977, %v1117
        %v1119 = vpop.f32.mrb[0].mxu0
        %v1120 = vpop.f32.mrb[0].mxu0
        %v1121 = vadd.f32 %v982, %v1120
        %v1122 = vpop.f32.mrb[0].mxu0
        %1123 = vmatprep.mubr.bf16.mxu0 0
        %1124 = vmatmul.mubr.bf16.gmra.mrb[0].mxu0 %v1031
        %v1125 = vpop.f32.mrb[0].mxu0
        %v1126 = vadd.f32 %v987, %v1125
        %v1127 = vpop.f32.mrb[0].mxu0
        %v1128 = vpop.f32.mrb[0].mxu0
        %v1129 = vadd.f32 %v992, %v1128
        %v1130 = vpop.f32.mrb[0].mxu0
        %1131 = vmatprep.mubr.bf16.mxu0 0
        %1132 = vmatmul.mubr.bf16.gmra.mrb[0].mxu0 %v1034
        %v1133 = vpop.f32.mrb[0].mxu0
        %v1134 = vadd.f32 %v997, %v1133
        %v1135 = vpop.f32.mrb[0].mxu0
        %v1136 = vpop.f32.mrb[0].mxu0
        %v1137 = vadd.f32 %v1002, %v1136
        %v1138 = vpop.f32.mrb[0].mxu0
        %1139 = vmatprep.mubr.bf16.mxu0 0
        %1140 = vmatmul.mubr.bf16.gmra.mrb[0].mxu0 %v1037
        %v1141 = vpop.f32.mrb[0].mxu0
        %v1142 = vadd.f32 %v1007, %v1141
        %v1143 = vpop.f32.mrb[0].mxu0
        %v1144 = vpop.f32.mrb[0].mxu0
        %v1145 = vadd.f32 %v1012, %v1144
        %v1146 = vpop.f32.mrb[0].mxu0
        %1147 = vdwg.mxu0
        %v1148 = vsel %vm1014, %v1086, -inf
        %1149 = vmax.xlane.f32.xlu0 %v1148
        %v1150 = vpop.xlane.xlu0 %1149
        %v1151 = vsel %vm1014, %v1089, -inf
        %1152 = vmax.xlane.f32.xlu0 %v1151
        %v1153 = vpop.xlane.xlu0 %1152
        %v1154 = vsel %vm1014, %v1094, -inf
        %1155 = vmax.xlane.f32.xlu0 %v1154
        %v1156 = vpop.xlane.xlu0 %1155
        %v1157 = vsel %vm1014, %v1097, -inf
        %1158 = vmax.xlane.f32.xlu0 %v1157
        %v1159 = vpop.xlane.xlu0 %1158
        %v1160 = vsel %vm1014, %v1102, -inf
        %1161 = vmax.xlane.f32.xlu0 %v1160
        %v1162 = vpop.xlane.xlu0 %1161
        %v1163 = vsel %vm1014, %v1105, -inf
        %1164 = vmax.xlane.f32.xlu0 %v1163
        %v1165 = vpop.xlane.xlu0 %1164
        %v1166 = vsel %vm1014, %v1110, -inf
        %1167 = vmax.xlane.f32.xlu0 %v1166
        %v1168 = vpop.xlane.xlu0 %1167
        %v1169 = vsel %vm1014, %v1113, -inf
        %1170 = vmax.xlane.f32.xlu0 %v1169
        %v1171 = vpop.xlane.xlu0 %1170
        %v1172 = vsel %vm1014, %v1118, -inf
        %1173 = vmax.xlane.f32.xlu0 %v1172
        %v1174 = vpop.xlane.xlu0 %1173
        %v1175 = vsel %vm1014, %v1121, -inf
        %1176 = vmax.xlane.f32.xlu0 %v1175
        %v1177 = vpop.xlane.xlu0 %1176
        %v1178 = vsel %vm1014, %v1126, -inf
        %1179 = vmax.xlane.f32.xlu0 %v1178
        %v1180 = vpop.xlane.xlu0 %1179
        %v1181 = vsel %vm1014, %v1129, -inf
        %1182 = vmax.xlane.f32.xlu0 %v1181
        %v1183 = vpop.xlane.xlu0 %1182
        %v1184 = vsel %vm1014, %v1134, -inf
        %1185 = vmax.xlane.f32.xlu0 %v1184
        %v1186 = vpop.xlane.xlu0 %1185
        %v1187 = vsel %vm1014, %v1137, -inf
        %1188 = vmax.xlane.f32.xlu0 %v1187
        %v1189 = vpop.xlane.xlu0 %1188
        %v1190 = vsel %vm1014, %v1142, -inf
        %1191 = vmax.xlane.f32.xlu0 %v1190
        %v1192 = vpop.xlane.xlu0 %1191
        %v1193 = vsel %vm1014, %v1145, -inf
        %1194 = vmax.xlane.f32.xlu0 %v1193
        %v1195 = vpop.xlane.xlu0 %1194
        %v1196 = vsub.f32 %v1086, %v1150
        %v1197 = vsub.f32 %v1089, %v1153
        %v1198 = vsub.f32 %v1094, %v1156
        %v1199 = vsub.f32 %v1097, %v1159
        %v1200 = vsub.f32 %v1102, %v1162
        %v1201 = vsub.f32 %v1105, %v1165
        %v1202 = vsub.f32 %v1110, %v1168
        %v1203 = vsub.f32 %v1113, %v1171
        %v1204 = vsub.f32 %v1118, %v1174
        %v1205 = vsub.f32 %v1121, %v1177
        %v1206 = vsub.f32 %v1126, %v1180
        %v1207 = vsub.f32 %v1129, %v1183
        %v1208 = vsub.f32 %v1134, %v1186
        %v1209 = vsub.f32 %v1137, %v1189
        %v1210 = vsub.f32 %v1142, %v1192
        %v1211 = vsub.f32 %v1145, %v1195
        %v1212 = vmul.f32 %v1196, 1.442695
        %v1213 = vpow.pop %v1212
        %v1214 = vmul.f32 %v1197, 1.442695
        %v1215 = vpow.pop %v1214
        %v1216 = vmul.f32 %v1198, 1.442695
        %v1217 = vpow.pop %v1216
        %v1218 = vmul.f32 %v1199, 1.442695
        %v1219 = vpow.pop %v1218
        %v1220 = vmul.f32 %v1200, 1.442695
        %v1221 = vpow.pop %v1220
        %v1222 = vmul.f32 %v1201, 1.442695
        %v1223 = vpow.pop %v1222
        %v1224 = vmul.f32 %v1202, 1.442695
        %v1225 = vpow.pop %v1224
        %v1226 = vmul.f32 %v1203, 1.442695
        %v1227 = vpow.pop %v1226
        %v1228 = vmul.f32 %v1204, 1.442695
        %v1229 = vpow.pop %v1228
        %v1230 = vmul.f32 %v1205, 1.442695
        %v1231 = vpow.pop %v1230
        %v1232 = vmul.f32 %v1206, 1.442695
        %v1233 = vpow.pop %v1232
        %v1234 = vmul.f32 %v1207, 1.442695
        %v1235 = vpow.pop %v1234
        %v1236 = vmul.f32 %v1208, 1.442695
        %v1237 = vpow.pop %v1236
        %v1238 = vmul.f32 %v1209, 1.442695
        %v1239 = vpow.pop %v1238
        %v1240 = vmul.f32 %v1210, 1.442695
        %v1241 = vpow.pop %v1240
        %v1242 = vmul.f32 %v1211, 1.442695
        %v1243 = vpow.pop %v1242
        %v1244 = vsel %vm1014, %v1213, 0.0
        %1245 = vadd.xlane.f32.xlu0 %v1244
        %v1246 = vpop.xlane.xlu0 %1245
        %v1247 = vsel %vm1014, %v1215, 0.0
        %1248 = vadd.xlane.f32.xlu0 %v1247
        %v1249 = vpop.xlane.xlu0 %1248
        %v1250 = vsel %vm1014, %v1217, 0.0
        %1251 = vadd.xlane.f32.xlu0 %v1250
        %v1252 = vpop.xlane.xlu0 %1251
        %v1253 = vsel %vm1014, %v1219, 0.0
        %1254 = vadd.xlane.f32.xlu0 %v1253
        %v1255 = vpop.xlane.xlu0 %1254
        %v1256 = vsel %vm1014, %v1221, 0.0
        %1257 = vadd.xlane.f32.xlu0 %v1256
        %v1258 = vpop.xlane.xlu0 %1257
        %v1259 = vsel %vm1014, %v1223, 0.0
        %1260 = vadd.xlane.f32.xlu0 %v1259
        %v1261 = vpop.xlane.xlu0 %1260
        %v1262 = vsel %vm1014, %v1225, 0.0
        %1263 = vadd.xlane.f32.xlu0 %v1262
        %v1264 = vpop.xlane.xlu0 %1263
        %v1265 = vsel %vm1014, %v1227, 0.0
        %1266 = vadd.xlane.f32.xlu0 %v1265
        %v1267 = vpop.xlane.xlu0 %1266
        %v1268 = vsel %vm1014, %v1229, 0.0
        %1269 = vadd.xlane.f32.xlu0 %v1268
        %v1270 = vpop.xlane.xlu0 %1269
        %v1271 = vsel %vm1014, %v1231, 0.0
        %1272 = vadd.xlane.f32.xlu0 %v1271
        %v1273 = vpop.xlane.xlu0 %1272
        %v1274 = vsel %vm1014, %v1233, 0.0
        %1275 = vadd.xlane.f32.xlu0 %v1274
        %v1276 = vpop.xlane.xlu0 %1275
        %v1277 = vsel %vm1014, %v1235, 0.0
        %1278 = vadd.xlane.f32.xlu0 %v1277
        %v1279 = vpop.xlane.xlu0 %1278
        %v1280 = vsel %vm1014, %v1237, 0.0
        %1281 = vadd.xlane.f32.xlu0 %v1280
        %v1282 = vpop.xlane.xlu0 %1281
        %v1283 = vsel %vm1014, %v1239, 0.0
        %1284 = vadd.xlane.f32.xlu0 %v1283
        %v1285 = vpop.xlane.xlu0 %1284
        %v1286 = vsel %vm1014, %v1241, 0.0
        %1287 = vadd.xlane.f32.xlu0 %v1286
        %v1288 = vpop.xlane.xlu0 %1287
        %v1289 = vsel %vm1014, %v1243, 0.0
        %1290 = vadd.xlane.f32.xlu0 %v1289
        %v1291 = vpop.xlane.xlu0 %1290
        %v1292 = vrcp.pop %v1246
        %v1293 = vrcp.pop %v1249
        %v1294 = vrcp.pop %v1252
        %v1295 = vrcp.pop %v1255
        %v1296 = vrcp.pop %v1258
        %v1297 = vrcp.pop %v1261
        %v1298 = vrcp.pop %v1264
        %v1299 = vrcp.pop %v1267
        %v1300 = vrcp.pop %v1270
        %v1301 = vrcp.pop %v1273
        %v1302 = vrcp.pop %v1276
        %v1303 = vrcp.pop %v1279
        %v1304 = vrcp.pop %v1282
        %v1305 = vrcp.pop %v1285
        %v1306 = vrcp.pop %v1288
        %v1307 = vrcp.pop %v1291
        %v1308 = vmul.f32 %v1213, %v1292
        %v1309 = vmul.f32 %v1215, %v1293
        %v1310 = vmul.f32 %v1217, %v1294
        %v1311 = vmul.f32 %v1219, %v1295
        %v1312 = vmul.f32 %v1221, %v1296
        %v1313 = vmul.f32 %v1223, %v1297
        %v1314 = vmul.f32 %v1225, %v1298
        %v1315 = vmul.f32 %v1227, %v1299
        %v1316 = vmul.f32 %v1229, %v1300
        %v1317 = vmul.f32 %v1231, %v1301
        %v1318 = vmul.f32 %v1233, %v1302
        %v1319 = vmul.f32 %v1235, %v1303
        %v1320 = vmul.f32 %v1237, %v1304
        %v1321 = vmul.f32 %v1239, %v1305
        %v1322 = vmul.f32 %v1241, %v1306
        %v1323 = vmul.f32 %v1243, %v1307
        %v1324 = vpack.c.bf16 %v1309, %v1308
        %v1325 = vpack.c.bf16 %v1311, %v1310
        %v1326 = vpack.c.bf16 %v1313, %v1312
        %v1327 = vpack.c.bf16 %v1315, %v1314
        %v1328 = vpack.c.bf16 %v1317, %v1316
        %v1329 = vpack.c.bf16 %v1319, %v1318
        %v1330 = vpack.c.bf16 %v1321, %v1320
        %v1331 = vpack.c.bf16 %v1323, %v1322
        %v1333 = vsel %vm1014, %v1324, 0
        %v1336 = vsel %vm1014, %v1325, 0
        %v1339 = vsel %vm1014, %v1326, 0
        %v1342 = vsel %vm1014, %v1327, 0
        %v1345 = vsel %vm1014, %v1328, 0
        %v1348 = vsel %vm1014, %v1329, 0
        %v1351 = vsel %vm1014, %v1330, 0
        %v1354 = vsel %vm1014, %v1331, 0
        %1356 = vmatprep.subr.bf16.mxu0 0
        %1357 = vmatpush1.bf16.msra.mxu0 %v927
        %1358 = vmatprep.subr.bf16.mxu0 0
        %1359 = vmatpush1.bf16.msra.mxu0 %v929
        %1360 = vmatprep.subr.bf16.mxu0 0
        %1361 = vmatpush1.bf16.msra.mxu0 %v931
        %1362 = vmatprep.subr.bf16.mxu0 0
        %1363 = vmatpush1.bf16.msra.mxu0 %v933
        %1364 = vmatprep.subr.bf16.mxu0 0
        %1365 = vmatpush1.bf16.msra.mxu0 0
        %1366 = vmatprep.subr.bf16.mxu0 0
        %1367 = vmatpush1.bf16.msra.mxu0 0
        %1368 = vmatprep.subr.bf16.mxu0 0
        %1369 = vmatpush1.bf16.msra.mxu0 0
        %1370 = vmatprep.subr.bf16.mxu0 0
        %1371 = vmatpush1.bf16.msra.mxu0 0
        %1372 = vmatprep.subr.bf16.mxu0 0
        %1373 = vmatpush1.bf16.msra.mxu0 0
        %1374 = vmatprep.subr.bf16.mxu0 0
        %1375 = vmatpush1.bf16.msra.mxu0 0
        %1376 = vmatprep.subr.bf16.mxu0 0
        %1377 = vmatpush1.bf16.msra.mxu0 0
        %1378 = vmatprep.subr.bf16.mxu0 0
        %1379 = vmatpush1.bf16.msra.mxu0 0
        %1380 = vmatprep.subr.bf16.mxu0 0
        %1381 = vmatpush1.bf16.msra.mxu0 0
        %1382 = vmatprep.subr.bf16.mxu0 0
        %1383 = vmatpush1.bf16.msra.mxu0 0
        %1384 = vmatprep.subr.bf16.mxu0 0
        %1385 = vmatpush1.bf16.msra.mxu0 0
        %1386 = vmatprep.subr.bf16.mxu0 0
        %1387 = vmatpush1.bf16.msra.mxu0 0
        %1388 = vmatprep.mubr.bf16.mxu0 0
        %1389 = vmatmul.mubr.bf16.gmra.mrb[0].mxu0 %v1333
        %v1390 = vpop.f32.mrb[0].mxu0
        %v1391 = vadd.f32 0.0, %v1390
        %v1392 = vpop.f32.mrb[0].mxu0
        %v1393 = vpop.f32.mrb[0].mxu0
        %v1394 = vadd.f32 0.0, %v1393
        %v1395 = vpop.f32.mrb[0].mxu0
        %1396 = vmatprep.mubr.bf16.mxu0 0
        %1397 = vmatmul.mubr.bf16.gmra.mrb[0].mxu0 %v1336
        %v1398 = vpop.f32.mrb[0].mxu0
        %v1399 = vadd.f32 0.0, %v1398
        %v1400 = vpop.f32.mrb[0].mxu0
        %v1401 = vpop.f32.mrb[0].mxu0
        %v1402 = vadd.f32 0.0, %v1401
        %v1403 = vpop.f32.mrb[0].mxu0
        %1404 = vmatprep.mubr.bf16.mxu0 0
        %1405 = vmatmul.mubr.bf16.gmra.mrb[0].mxu0 %v1339
        %v1406 = vpop.f32.mrb[0].mxu0
        %v1407 = vadd.f32 0.0, %v1406
        %v1408 = vpop.f32.mrb[0].mxu0
        %v1409 = vpop.f32.mrb[0].mxu0
        %v1410 = vadd.f32 0.0, %v1409
        %v1411 = vpop.f32.mrb[0].mxu0
        %1412 = vmatprep.mubr.bf16.mxu0 0
        %1413 = vmatmul.mubr.bf16.gmra.mrb[0].mxu0 %v1342
        %v1414 = vpop.f32.mrb[0].mxu0
        %v1415 = vadd.f32 0.0, %v1414
        %v1416 = vpop.f32.mrb[0].mxu0
        %v1417 = vpop.f32.mrb[0].mxu0
        %v1418 = vadd.f32 0.0, %v1417
        %v1419 = vpop.f32.mrb[0].mxu0
        %1420 = vmatprep.mubr.bf16.mxu0 0
        %1421 = vmatmul.mubr.bf16.gmra.mrb[0].mxu0 %v1345
        %v1422 = vpop.f32.mrb[0].mxu0
        %v1423 = vadd.f32 0.0, %v1422
        %v1424 = vpop.f32.mrb[0].mxu0
        %v1425 = vpop.f32.mrb[0].mxu0
        %v1426 = vadd.f32 0.0, %v1425
        %v1427 = vpop.f32.mrb[0].mxu0
        %1428 = vmatprep.mubr.bf16.mxu0 0
        %1429 = vmatmul.mubr.bf16.gmra.mrb[0].mxu0 %v1348
        %v1430 = vpop.f32.mrb[0].mxu0
        %v1431 = vadd.f32 0.0, %v1430
        %v1432 = vpop.f32.mrb[0].mxu0
        %v1433 = vpop.f32.mrb[0].mxu0
        %v1434 = vadd.f32 0.0, %v1433
        %v1435 = vpop.f32.mrb[0].mxu0
        %1436 = vmatprep.mubr.bf16.mxu0 0
        %1437 = vmatmul.mubr.bf16.gmra.mrb[0].mxu0 %v1351
        %v1438 = vpop.f32.mrb[0].mxu0
        %v1439 = vadd.f32 0.0, %v1438
        %v1440 = vpop.f32.mrb[0].mxu0
        %v1441 = vpop.f32.mrb[0].mxu0
        %v1442 = vadd.f32 0.0, %v1441
        %v1443 = vpop.f32.mrb[0].mxu0
        %1444 = vmatprep.mubr.bf16.mxu0 0
        %1445 = vmatmul.mubr.bf16.gmra.mrb[0].mxu0 %v1354
        %v1446 = vpop.f32.mrb[0].mxu0
        %v1447 = vadd.f32 0.0, %v1446
        %v1448 = vpop.f32.mrb[0].mxu0
        %v1449 = vpop.f32.mrb[0].mxu0
        %v1450 = vadd.f32 0.0, %v1449
        %v1451 = vpop.f32.mrb[0].mxu0
        %1452 = vdwg.mxu0
        %v1453 = vpack.c.bf16 %v1394, %v1391
        %v1454 = vpack.c.bf16 %v1402, %v1399
        %v1455 = vpack.c.bf16 %v1410, %v1407
        %v1456 = vpack.c.bf16 %v1418, %v1415
        %v1457 = vpack.c.bf16 %v1426, %v1423
        %v1458 = vpack.c.bf16 %v1434, %v1431
        %v1459 = vpack.c.bf16 %v1442, %v1439
        %v1460 = vpack.c.bf16 %v1450, %v1447
        %1461 = vst.msk [vmem:[#allocation3] sm:$0xff] %vm1014, %v1453
        %1462 = vst.msk [vmem:[#allocation3 + $0x8] sm:$0xff] %vm1014, %v1454
        %1463 = vst.msk [vmem:[#allocation3 + $0x10] sm:$0xff] %vm1014, %v1455
        %1464 = vst.msk [vmem:[#allocation3 + $0x18] sm:$0xff] %vm1014, %v1456
        %1465 = vst.msk [vmem:[#allocation3 + $0x20] sm:$0xff] %vm1014, %v1457
        %1466 = vst.msk [vmem:[#allocation3 + $0x28] sm:$0xff] %vm1014, %v1458
        %1467 = vst.msk [vmem:[#allocation3 + $0x30] sm:$0xff] %vm1014, %v1459
        %1468 = vst.msk [vmem:[#allocation3 + $0x38] sm:$0xff] %vm1014, %v1460
        %1477 = vrot.lane.b32.xlu0 %v918, 64
        %v1478 = vpop.permute.xlu0 %1477
        %1479 = vrot.lane.b32.xlu0 %v919, 64
        %v1480 = vpop.permute.xlu0 %1479
        %1481 = vrot.lane.b32.xlu0 %v920, 64
        %v1482 = vpop.permute.xlu0 %1481
        %1483 = vrot.lane.b32.xlu0 %v921, 64
        %v1484 = vpop.permute.xlu0 %1483
        %1485 = vrot.lane.b32.xlu0 %v922, 64
        %v1486 = vpop.permute.xlu0 %1485
        %1487 = vrot.lane.b32.xlu0 %v923, 64
        %v1488 = vpop.permute.xlu0 %1487
        %1489 = vrot.lane.b32.xlu0 %v924, 64
        %v1490 = vpop.permute.xlu0 %1489
        %1491 = vrot.lane.b32.xlu0 %v925, 64
        %v1492 = vpop.permute.xlu0 %1491
        %1497 = vrot.lane.b32.xlu0 %v926, 64
        %v1498 = vpop.permute.xlu0 %1497
        %1499 = vrot.lane.b32.xlu0 %v928, 64
        %v1500 = vpop.permute.xlu0 %1499
        %1501 = vrot.lane.b32.xlu0 %v930, 64
        %v1502 = vpop.permute.xlu0 %1501
        %1503 = vrot.lane.b32.xlu0 %v932, 64
        %v1504 = vpop.permute.xlu0 %1503
        %v1506 = vsel %vm1014, %v1478, 0
        %v1509 = vsel %vm1014, %v1480, 0
        %v1512 = vsel %vm1014, %v1482, 0
        %v1515 = vsel %vm1014, %v1484, 0
        %v1518 = vsel %vm1014, %v1486, 0
        %v1521 = vsel %vm1014, %v1488, 0
        %v1524 = vsel %vm1014, %v1490, 0
        %v1527 = vsel %vm1014, %v1492, 0
        %v1530 = vsel %vm1014, %v1498, 0
        %v1533 = vsel %vm1014, %v1500, 0
        %v1536 = vsel %vm1014, %v1502, 0
        %v1539 = vsel %vm1014, %v1504, 0
        %1541 = vmatprep.subr.bf16.mxu0 0
        %1542 = vmatpush1.bf16.xpose.msra.mxu0 %v1530
        %1543 = vmatprep.subr.bf16.mxu0 0
        %1544 = vmatpush1.bf16.xpose.msra.mxu0 %v1533
        %1545 = vmatprep.subr.bf16.mxu0 0
        %1546 = vmatpush1.bf16.xpose.msra.mxu0 %v1536
        %1547 = vmatprep.subr.bf16.mxu0 0
        %1548 = vmatpush1.bf16.xpose.msra.mxu0 %v1539
        %1549 = vmatprep.subr.bf16.mxu0 0
        %1550 = vmatpush1.bf16.xpose.msra.mxu0 0
        %1551 = vmatprep.subr.bf16.mxu0 0
        %1552 = vmatpush1.bf16.xpose.msra.mxu0 0
        %1553 = vmatprep.subr.bf16.mxu0 0
        %1554 = vmatpush1.bf16.xpose.msra.mxu0 0
        %1555 = vmatprep.subr.bf16.mxu0 0
        %1556 = vmatpush1.bf16.xpose.msra.mxu0 0
        %1557 = vmatprep.subr.bf16.mxu0 0
        %1558 = vmatpush1.bf16.xpose.msra.mxu0 0
        %1559 = vmatprep.subr.bf16.mxu0 0
        %1560 = vmatpush1.bf16.xpose.msra.mxu0 0
        %1561 = vmatprep.subr.bf16.mxu0 0
        %1562 = vmatpush1.bf16.xpose.msra.mxu0 0
        %1563 = vmatprep.subr.bf16.mxu0 0
        %1564 = vmatpush1.bf16.xpose.msra.mxu0 0
        %1565 = vmatprep.subr.bf16.mxu0 0
        %1566 = vmatpush1.bf16.xpose.msra.mxu0 0
        %1567 = vmatprep.subr.bf16.mxu0 0
        %1568 = vmatpush1.bf16.xpose.msra.mxu0 0
        %1569 = vmatprep.subr.bf16.mxu0 0
        %1570 = vmatpush1.bf16.xpose.msra.mxu0 0
        %1571 = vmatprep.subr.bf16.mxu0 0
        %1572 = vmatpush1.bf16.xpose.msra.mxu0 0
        %1573 = vmatprep.mubr.bf16.mxu0 0
        %1574 = vmatmul.mubr.bf16.gmra.mrb[0].mxu0 %v1506
        %v1575 = vpop.f32.mrb[0].mxu0
        %v1576 = vadd.f32 %v937, %v1575
        %v1577 = vpop.f32.mrb[0].mxu0
        %v1578 = vpop.f32.mrb[0].mxu0
        %v1579 = vadd.f32 %v942, %v1578
        %v1580 = vpop.f32.mrb[0].mxu0
        %1581 = vmatprep.mubr.bf16.mxu0 0
        %1582 = vmatmul.mubr.bf16.gmra.mrb[0].mxu0 %v1509
        %v1583 = vpop.f32.mrb[0].mxu0
        %v1584 = vadd.f32 %v947, %v1583
        %v1585 = vpop.f32.mrb[0].mxu0
        %v1586 = vpop.f32.mrb[0].mxu0
        %v1587 = vadd.f32 %v952, %v1586
        %v1588 = vpop.f32.mrb[0].mxu0
        %1589 = vmatprep.mubr.bf16.mxu0 0
        %1590 = vmatmul.mubr.bf16.gmra.mrb[0].mxu0 %v1512
        %v1591 = vpop.f32.mrb[0].mxu0
        %v1592 = vadd.f32 %v957, %v1591
        %v1593 = vpop.f32.mrb[0].mxu0
        %v1594 = vpop.f32.mrb[0].mxu0
        %v1595 = vadd.f32 %v962, %v1594
        %v1596 = vpop.f32.mrb[0].mxu0
        %1597 = vmatprep.mubr.bf16.mxu0 0
        %1598 = vmatmul.mubr.bf16.gmra.mrb[0].mxu0 %v1515
        %v1599 = vpop.f32.mrb[0].mxu0
        %v1600 = vadd.f32 %v967, %v1599
        %v1601 = vpop.f32.mrb[0].mxu0
        %v1602 = vpop.f32.mrb[0].mxu0
        %v1603 = vadd.f32 %v972, %v1602
        %v1604 = vpop.f32.mrb[0].mxu0
        %1605 = vmatprep.mubr.bf16.mxu0 0
        %1606 = vmatmul.mubr.bf16.gmra.mrb[0].mxu0 %v1518
        %v1607 = vpop.f32.mrb[0].mxu0
        %v1608 = vadd.f32 %v977, %v1607
        %v1609 = vpop.f32.mrb[0].mxu0
        %v1610 = vpop.f32.mrb[0].mxu0
        %v1611 = vadd.f32 %v982, %v1610
        %v1612 = vpop.f32.mrb[0].mxu0
        %1613 = vmatprep.mubr.bf16.mxu0 0
        %1614 = vmatmul.mubr.bf16.gmra.mrb[0].mxu0 %v1521
        %v1615 = vpop.f32.mrb[0].mxu0
        %v1616 = vadd.f32 %v987, %v1615
        %v1617 = vpop.f32.mrb[0].mxu0
        %v1618 = vpop.f32.mrb[0].mxu0
        %v1619 = vadd.f32 %v992, %v1618
        %v1620 = vpop.f32.mrb[0].mxu0
        %1621 = vmatprep.mubr.bf16.mxu0 0
        %1622 = vmatmul.mubr.bf16.gmra.mrb[0].mxu0 %v1524
        %v1623 = vpop.f32.mrb[0].mxu0
        %v1624 = vadd.f32 %v997, %v1623
        %v1625 = vpop.f32.mrb[0].mxu0
        %v1626 = vpop.f32.mrb[0].mxu0
        %v1627 = vadd.f32 %v1002, %v1626
        %v1628 = vpop.f32.mrb[0].mxu0
        %1629 = vmatprep.mubr.bf16.mxu0 0
        %1630 = vmatmul.mubr.bf16.gmra.mrb[0].mxu0 %v1527
        %v1631 = vpop.f32.mrb[0].mxu0
        %v1632 = vadd.f32 %v1007, %v1631
        %v1633 = vpop.f32.mrb[0].mxu0
        %v1634 = vpop.f32.mrb[0].mxu0
        %v1635 = vadd.f32 %v1012, %v1634
        %v1636 = vpop.f32.mrb[0].mxu0
        %1637 = vdwg.mxu0
        %v1638 = vsel %vm1014, %v1576, -inf
        %1639 = vmax.xlane.f32.xlu0 %v1638
        %v1640 = vpop.xlane.xlu0 %1639
        %v1641 = vsel %vm1014, %v1579, -inf
        %1642 = vmax.xlane.f32.xlu0 %v1641
        %v1643 = vpop.xlane.xlu0 %1642
        %v1644 = vsel %vm1014, %v1584, -inf
        %1645 = vmax.xlane.f32.xlu0 %v1644
        %v1646 = vpop.xlane.xlu0 %1645
        %v1647 = vsel %vm1014, %v1587, -inf
        %1648 = vmax.xlane.f32.xlu0 %v1647
        %v1649 = vpop.xlane.xlu0 %1648
        %v1650 = vsel %vm1014, %v1592, -inf
        %1651 = vmax.xlane.f32.xlu0 %v1650
        %v1652 = vpop.xlane.xlu0 %1651
        %v1653 = vsel %vm1014, %v1595, -inf
        %1654 = vmax.xlane.f32.xlu0 %v1653
        %v1655 = vpop.xlane.xlu0 %1654
        %v1656 = vsel %vm1014, %v1600, -inf
        %1657 = vmax.xlane.f32.xlu0 %v1656
        %v1658 = vpop.xlane.xlu0 %1657
        %v1659 = vsel %vm1014, %v1603, -inf
        %1660 = vmax.xlane.f32.xlu0 %v1659
        %v1661 = vpop.xlane.xlu0 %1660
        %v1662 = vsel %vm1014, %v1608, -inf
        %1663 = vmax.xlane.f32.xlu0 %v1662
        %v1664 = vpop.xlane.xlu0 %1663
        %v1665 = vsel %vm1014, %v1611, -inf
        %1666 = vmax.xlane.f32.xlu0 %v1665
        %v1667 = vpop.xlane.xlu0 %1666
        %v1668 = vsel %vm1014, %v1616, -inf
        %1669 = vmax.xlane.f32.xlu0 %v1668
        %v1670 = vpop.xlane.xlu0 %1669
        %v1671 = vsel %vm1014, %v1619, -inf
        %1672 = vmax.xlane.f32.xlu0 %v1671
        %v1673 = vpop.xlane.xlu0 %1672
        %v1674 = vsel %vm1014, %v1624, -inf
        %1675 = vmax.xlane.f32.xlu0 %v1674
        %v1676 = vpop.xlane.xlu0 %1675
        %v1677 = vsel %vm1014, %v1627, -inf
        %1678 = vmax.xlane.f32.xlu0 %v1677
        %v1679 = vpop.xlane.xlu0 %1678
        %v1680 = vsel %vm1014, %v1632, -inf
        %1681 = vmax.xlane.f32.xlu0 %v1680
        %v1682 = vpop.xlane.xlu0 %1681
        %v1683 = vsel %vm1014, %v1635, -inf
        %1684 = vmax.xlane.f32.xlu0 %v1683
        %v1685 = vpop.xlane.xlu0 %1684
        %v1686 = vsub.f32 %v1576, %v1640
        %v1687 = vsub.f32 %v1579, %v1643
        %v1688 = vsub.f32 %v1584, %v1646
        %v1689 = vsub.f32 %v1587, %v1649
        %v1690 = vsub.f32 %v1592, %v1652
        %v1691 = vsub.f32 %v1595, %v1655
        %v1692 = vsub.f32 %v1600, %v1658
        %v1693 = vsub.f32 %v1603, %v1661
        %v1694 = vsub.f32 %v1608, %v1664
        %v1695 = vsub.f32 %v1611, %v1667
        %v1696 = vsub.f32 %v1616, %v1670
        %v1697 = vsub.f32 %v1619, %v1673
        %v1698 = vsub.f32 %v1624, %v1676
        %v1699 = vsub.f32 %v1627, %v1679
        %v1700 = vsub.f32 %v1632, %v1682
        %v1701 = vsub.f32 %v1635, %v1685
        %v1702 = vmul.f32 %v1686, 1.442695
        %v1703 = vpow.pop %v1702
        %v1704 = vmul.f32 %v1687, 1.442695
        %v1705 = vpow.pop %v1704
        %v1706 = vmul.f32 %v1688, 1.442695
        %v1707 = vpow.pop %v1706
        %v1708 = vmul.f32 %v1689, 1.442695
        %v1709 = vpow.pop %v1708
        %v1710 = vmul.f32 %v1690, 1.442695
        %v1711 = vpow.pop %v1710
        %v1712 = vmul.f32 %v1691, 1.442695
        %v1713 = vpow.pop %v1712
        %v1714 = vmul.f32 %v1692, 1.442695
        %v1715 = vpow.pop %v1714
        %v1716 = vmul.f32 %v1693, 1.442695
        %v1717 = vpow.pop %v1716
        %v1718 = vmul.f32 %v1694, 1.442695
        %v1719 = vpow.pop %v1718
        %v1720 = vmul.f32 %v1695, 1.442695
        %v1721 = vpow.pop %v1720
        %v1722 = vmul.f32 %v1696, 1.442695
        %v1723 = vpow.pop %v1722
        %v1724 = vmul.f32 %v1697, 1.442695
        %v1725 = vpow.pop %v1724
        %v1726 = vmul.f32 %v1698, 1.442695
        %v1727 = vpow.pop %v1726
        %v1728 = vmul.f32 %v1699, 1.442695
        %v1729 = vpow.pop %v1728
        %v1730 = vmul.f32 %v1700, 1.442695
        %v1731 = vpow.pop %v1730
        %v1732 = vmul.f32 %v1701, 1.442695
        %v1733 = vpow.pop %v1732
        %v1734 = vsel %vm1014, %v1703, 0.0
        %1735 = vadd.xlane.f32.xlu0 %v1734
        %v1736 = vpop.xlane.xlu0 %1735
        %v1737 = vsel %vm1014, %v1705, 0.0
        %1738 = vadd.xlane.f32.xlu0 %v1737
        %v1739 = vpop.xlane.xlu0 %1738
        %v1740 = vsel %vm1014, %v1707, 0.0
        %1741 = vadd.xlane.f32.xlu0 %v1740
        %v1742 = vpop.xlane.xlu0 %1741
        %v1743 = vsel %vm1014, %v1709, 0.0
        %1744 = vadd.xlane.f32.xlu0 %v1743
        %v1745 = vpop.xlane.xlu0 %1744
        %v1746 = vsel %vm1014, %v1711, 0.0
        %1747 = vadd.xlane.f32.xlu0 %v1746
        %v1748 = vpop.xlane.xlu0 %1747
        %v1749 = vsel %vm1014, %v1713, 0.0
        %1750 = vadd.xlane.f32.xlu0 %v1749
        %v1751 = vpop.xlane.xlu0 %1750
        %v1752 = vsel %vm1014, %v1715, 0.0
        %1753 = vadd.xlane.f32.xlu0 %v1752
        %v1754 = vpop.xlane.xlu0 %1753
        %v1755 = vsel %vm1014, %v1717, 0.0
        %1756 = vadd.xlane.f32.xlu0 %v1755
        %v1757 = vpop.xlane.xlu0 %1756
        %v1758 = vsel %vm1014, %v1719, 0.0
        %1759 = vadd.xlane.f32.xlu0 %v1758
        %v1760 = vpop.xlane.xlu0 %1759
        %v1761 = vsel %vm1014, %v1721, 0.0
        %1762 = vadd.xlane.f32.xlu0 %v1761
        %v1763 = vpop.xlane.xlu0 %1762
        %v1764 = vsel %vm1014, %v1723, 0.0
        %1765 = vadd.xlane.f32.xlu0 %v1764
        %v1766 = vpop.xlane.xlu0 %1765
        %v1767 = vsel %vm1014, %v1725, 0.0
        %1768 = vadd.xlane.f32.xlu0 %v1767
        %v1769 = vpop.xlane.xlu0 %1768
        %v1770 = vsel %vm1014, %v1727, 0.0
        %1771 = vadd.xlane.f32.xlu0 %v1770
        %v1772 = vpop.xlane.xlu0 %1771
        %v1773 = vsel %vm1014, %v1729, 0.0
        %1774 = vadd.xlane.f32.xlu0 %v1773
        %v1775 = vpop.xlane.xlu0 %1774
        %v1776 = vsel %vm1014, %v1731, 0.0
        %1777 = vadd.xlane.f32.xlu0 %v1776
        %v1778 = vpop.xlane.xlu0 %1777
        %v1779 = vsel %vm1014, %v1733, 0.0
        %1780 = vadd.xlane.f32.xlu0 %v1779
        %v1781 = vpop.xlane.xlu0 %1780
        %v1782 = vrcp.pop %v1736
        %v1783 = vrcp.pop %v1739
        %v1784 = vrcp.pop %v1742
        %v1785 = vrcp.pop %v1745
        %v1786 = vrcp.pop %v1748
        %v1787 = vrcp.pop %v1751
        %v1788 = vrcp.pop %v1754
        %v1789 = vrcp.pop %v1757
        %v1790 = vrcp.pop %v1760
        %v1791 = vrcp.pop %v1763
        %v1792 = vrcp.pop %v1766
        %v1793 = vrcp.pop %v1769
        %v1794 = vrcp.pop %v1772
        %v1795 = vrcp.pop %v1775
        %v1796 = vrcp.pop %v1778
        %v1797 = vrcp.pop %v1781
        %v1798 = vmul.f32 %v1703, %v1782
        %v1799 = vmul.f32 %v1705, %v1783
        %v1800 = vmul.f32 %v1707, %v1784
        %v1801 = vmul.f32 %v1709, %v1785
        %v1802 = vmul.f32 %v1711, %v1786
        %v1803 = vmul.f32 %v1713, %v1787
        %v1804 = vmul.f32 %v1715, %v1788
        %v1805 = vmul.f32 %v1717, %v1789
        %v1806 = vmul.f32 %v1719, %v1790
        %v1807 = vmul.f32 %v1721, %v1791
        %v1808 = vmul.f32 %v1723, %v1792
        %v1809 = vmul.f32 %v1725, %v1793
        %v1810 = vmul.f32 %v1727, %v1794
        %v1811 = vmul.f32 %v1729, %v1795
        %v1812 = vmul.f32 %v1731, %v1796
        %v1813 = vmul.f32 %v1733, %v1797
        %v1814 = vpack.c.bf16 %v1799, %v1798
        %v1815 = vpack.c.bf16 %v1801, %v1800
        %v1816 = vpack.c.bf16 %v1803, %v1802
        %v1817 = vpack.c.bf16 %v1805, %v1804
        %v1818 = vpack.c.bf16 %v1807, %v1806
        %v1819 = vpack.c.bf16 %v1809, %v1808
        %v1820 = vpack.c.bf16 %v1811, %v1810
        %v1821 = vpack.c.bf16 %v1813, %v1812
        %1826 = vrot.lane.b32.xlu0 %v927, 64
        %v1827 = vpop.permute.xlu0 %1826
        %1828 = vrot.lane.b32.xlu0 %v929, 64
        %v1829 = vpop.permute.xlu0 %1828
        %1830 = vrot.lane.b32.xlu0 %v931, 64
        %v1831 = vpop.permute.xlu0 %1830
        %1832 = vrot.lane.b32.xlu0 %v933, 64
        %v1833 = vpop.permute.xlu0 %1832
        %v1839 = vsel %vm1014, %v1814, 0
        %v1842 = vsel %vm1014, %v1815, 0
        %v1845 = vsel %vm1014, %v1816, 0
        %v1848 = vsel %vm1014, %v1817, 0
        %v1851 = vsel %vm1014, %v1818, 0
        %v1854 = vsel %vm1014, %v1819, 0
        %v1857 = vsel %vm1014, %v1820, 0
        %v1860 = vsel %vm1014, %v1821, 0
        %1862 = vmatprep.subr.bf16.mxu0 0
        %1863 = vmatpush1.bf16.msra.mxu0 %v1827
        %1864 = vmatprep.subr.bf16.mxu0 0
        %1865 = vmatpush1.bf16.msra.mxu0 %v1829
        %1866 = vmatprep.subr.bf16.mxu0 0
        %1867 = vmatpush1.bf16.msra.mxu0 %v1831
        %1868 = vmatprep.subr.bf16.mxu0 0
        %1869 = vmatpush1.bf16.msra.mxu0 %v1833
        %1870 = vmatprep.subr.bf16.mxu0 0
        %1871 = vmatpush1.bf16.msra.mxu0 0
        %1872 = vmatprep.subr.bf16.mxu0 0
        %1873 = vmatpush1.bf16.msra.mxu0 0
        %1874 = vmatprep.subr.bf16.mxu0 0
        %1875 = vmatpush1.bf16.msra.mxu0 0
        %1876 = vmatprep.subr.bf16.mxu0 0
        %1877 = vmatpush1.bf16.msra.mxu0 0
        %1878 = vmatprep.subr.bf16.mxu0 0
        %1879 = vmatpush1.bf16.msra.mxu0 0
        %1880 = vmatprep.subr.bf16.mxu0 0
        %1881 = vmatpush1.bf16.msra.mxu0 0
        %1882 = vmatprep.subr.bf16.mxu0 0
        %1883 = vmatpush1.bf16.msra.mxu0 0
        %1884 = vmatprep.subr.bf16.mxu0 0
        %1885 = vmatpush1.bf16.msra.mxu0 0
        %1886 = vmatprep.subr.bf16.mxu0 0
        %1887 = vmatpush1.bf16.msra.mxu0 0
        %1888 = vmatprep.subr.bf16.mxu0 0
        %1889 = vmatpush1.bf16.msra.mxu0 0
        %1890 = vmatprep.subr.bf16.mxu0 0
        %1891 = vmatpush1.bf16.msra.mxu0 0
        %1892 = vmatprep.subr.bf16.mxu0 0
        %1893 = vmatpush1.bf16.msra.mxu0 0
        %1894 = vmatprep.mubr.bf16.mxu0 0
        %1895 = vmatmul.mubr.bf16.gmra.mrb[0].mxu0 %v1839
        %v1896 = vpop.f32.mrb[0].mxu0
        %v1897 = vadd.f32 0.0, %v1896
        %v1898 = vpop.f32.mrb[0].mxu0
        %v1899 = vpop.f32.mrb[0].mxu0
        %v1900 = vadd.f32 0.0, %v1899
        %v1901 = vpop.f32.mrb[0].mxu0
        %1902 = vmatprep.mubr.bf16.mxu0 0
        %1903 = vmatmul.mubr.bf16.gmra.mrb[0].mxu0 %v1842
        %v1904 = vpop.f32.mrb[0].mxu0
        %v1905 = vadd.f32 0.0, %v1904
        %v1906 = vpop.f32.mrb[0].mxu0
        %v1907 = vpop.f32.mrb[0].mxu0
        %v1908 = vadd.f32 0.0, %v1907
        %v1909 = vpop.f32.mrb[0].mxu0
        %1910 = vmatprep.mubr.bf16.mxu0 0
        %1911 = vmatmul.mubr.bf16.gmra.mrb[0].mxu0 %v1845
        %v1912 = vpop.f32.mrb[0].mxu0
        %v1913 = vadd.f32 0.0, %v1912
        %v1914 = vpop.f32.mrb[0].mxu0
        %v1915 = vpop.f32.mrb[0].mxu0
        %v1916 = vadd.f32 0.0, %v1915
        %v1917 = vpop.f32.mrb[0].mxu0
        %1918 = vmatprep.mubr.bf16.mxu0 0
        %1919 = vmatmul.mubr.bf16.gmra.mrb[0].mxu0 %v1848
        %v1920 = vpop.f32.mrb[0].mxu0
        %v1921 = vadd.f32 0.0, %v1920
        %v1922 = vpop.f32.mrb[0].mxu0
        %v1923 = vpop.f32.mrb[0].mxu0
        %v1924 = vadd.f32 0.0, %v1923
        %v1925 = vpop.f32.mrb[0].mxu0
        %1926 = vmatprep.mubr.bf16.mxu0 0
        %1927 = vmatmul.mubr.bf16.gmra.mrb[0].mxu0 %v1851
        %v1928 = vpop.f32.mrb[0].mxu0
        %v1929 = vadd.f32 0.0, %v1928
        %v1930 = vpop.f32.mrb[0].mxu0
        %v1931 = vpop.f32.mrb[0].mxu0
        %v1932 = vadd.f32 0.0, %v1931
        %v1933 = vpop.f32.mrb[0].mxu0
        %1934 = vmatprep.mubr.bf16.mxu0 0
        %1935 = vmatmul.mubr.bf16.gmra.mrb[0].mxu0 %v1854
        %v1936 = vpop.f32.mrb[0].mxu0
        %v1937 = vadd.f32 0.0, %v1936
        %v1938 = vpop.f32.mrb[0].mxu0
        %v1939 = vpop.f32.mrb[0].mxu0
        %v1940 = vadd.f32 0.0, %v1939
        %v1941 = vpop.f32.mrb[0].mxu0
        %1942 = vmatprep.mubr.bf16.mxu0 0
        %1943 = vmatmul.mubr.bf16.gmra.mrb[0].mxu0 %v1857
        %v1944 = vpop.f32.mrb[0].mxu0
        %v1945 = vadd.f32 0.0, %v1944
        %v1946 = vpop.f32.mrb[0].mxu0
        %v1947 = vpop.f32.mrb[0].mxu0
        %v1948 = vadd.f32 0.0, %v1947
        %v1949 = vpop.f32.mrb[0].mxu0
        %1950 = vmatprep.mubr.bf16.mxu0 0
        %1951 = vmatmul.mubr.bf16.gmra.mrb[0].mxu0 %v1860
        %v1952 = vpop.f32.mrb[0].mxu0
        %v1953 = vadd.f32 0.0, %v1952
        %v1954 = vpop.f32.mrb[0].mxu0
        %v1955 = vpop.f32.mrb[0].mxu0
        %v1956 = vadd.f32 0.0, %v1955
        %v1957 = vpop.f32.mrb[0].mxu0
        %1958 = vdwg.mxu0
        %v1959 = vpack.c.bf16 %v1900, %v1897
        %v1960 = vpack.c.bf16 %v1908, %v1905
        %v1961 = vpack.c.bf16 %v1916, %v1913
        %v1962 = vpack.c.bf16 %v1924, %v1921
        %v1963 = vpack.c.bf16 %v1932, %v1929
        %v1964 = vpack.c.bf16 %v1940, %v1937
        %v1965 = vpack.c.bf16 %v1948, %v1945
        %v1966 = vpack.c.bf16 %v1956, %v1953
        %1975 = vrot.lane.b32.xlu0 %v1959, 64
        %v1976 = vpop.permute.xlu0 %1975
        %1977 = vrot.lane.b32.xlu0 %v1960, 64
        %v1978 = vpop.permute.xlu0 %1977
        %1979 = vrot.lane.b32.xlu0 %v1961, 64
        %v1980 = vpop.permute.xlu0 %1979
        %1981 = vrot.lane.b32.xlu0 %v1962, 64
        %v1982 = vpop.permute.xlu0 %1981
        %1983 = vrot.lane.b32.xlu0 %v1963, 64
        %v1984 = vpop.permute.xlu0 %1983
        %1985 = vrot.lane.b32.xlu0 %v1964, 64
        %v1986 = vpop.permute.xlu0 %1985
        %1987 = vrot.lane.b32.xlu0 %v1965, 64
        %v1988 = vpop.permute.xlu0 %1987
        %1989 = vrot.lane.b32.xlu0 %v1966, 64
        %v1990 = vpop.permute.xlu0 %1989
        %vm1999 = vcmask 1048064
        %2000 = vst.msk [vmem:[#allocation3] sm:$0xff] %vm1999, %v1976
        %2001 = vst.msk [vmem:[#allocation3 + $0x8] sm:$0xff] %vm1999, %v1978
        %2002 = vst.msk [vmem:[#allocation3 + $0x10] sm:$0xff] %vm1999, %v1980
        %2003 = vst.msk [vmem:[#allocation3 + $0x18] sm:$0xff] %vm1999, %v1982
        %2004 = vst.msk [vmem:[#allocation3 + $0x20] sm:$0xff] %vm1999, %v1984
        %2005 = vst.msk [vmem:[#allocation3 + $0x28] sm:$0xff] %vm1999, %v1986
        %2006 = vst.msk [vmem:[#allocation3 + $0x30] sm:$0xff] %vm1999, %v1988
        %2007 = vst.msk [vmem:[#allocation3 + $0x38] sm:$0xff] %vm1999, %v1990
        %v2008 = vld [vmem:[#allocation3] sm:$0xff]
        %v2009 = vld [vmem:[#allocation3 + $0x8] sm:$0xff]
        %v2010 = vld [vmem:[#allocation3 + $0x10] sm:$0xff]
        %v2011 = vld [vmem:[#allocation3 + $0x18] sm:$0xff]
        %v2012 = vld [vmem:[#allocation3 + $0x20] sm:$0xff]
        %v2013 = vld [vmem:[#allocation3 + $0x28] sm:$0xff]
        %v2014 = vld [vmem:[#allocation3 + $0x30] sm:$0xff]
        %v2015 = vld [vmem:[#allocation3 + $0x38] sm:$0xff]
        %v2016 = vld [vmem:[#allocation13] sm:$0xf]
        %v2017 = vld [vmem:[#allocation13 + $0x4] sm:$0xf]
        %v2018 = vld [vmem:[#allocation13 + $0x8] sm:$0xf]
        %v2019 = vld [vmem:[#allocation13 + $0xc] sm:$0xf]
        %v2020 = vld [vmem:[#allocation13 + $0x10] sm:$0xf]
        %v2021 = vld [vmem:[#allocation13 + $0x14] sm:$0xf]
        %v2022 = vld [vmem:[#allocation13 + $0x18] sm:$0xf]
        %v2023 = vld [vmem:[#allocation13 + $0x1c] sm:$0xf]
        %v2024 = vld [vmem:[#allocation13 + $0x20] sm:$0xf]
        %v2025 = vld [vmem:[#allocation13 + $0x24] sm:$0xf]
        %v2026 = vld [vmem:[#allocation13 + $0x28] sm:$0xf]
        %v2027 = vld [vmem:[#allocation13 + $0x2c] sm:$0xf]
        %v2028 = vld [vmem:[#allocation13 + $0x30] sm:$0xf]
        %v2029 = vld [vmem:[#allocation13 + $0x34] sm:$0xf]
        %v2030 = vld [vmem:[#allocation13 + $0x38] sm:$0xf]
        %v2031 = vld [vmem:[#allocation13 + $0x3c] sm:$0xf]
        %v2032 = vld [vmem:[#allocation15] sm:$0x1]
        %v2034 = vlaneseq
        %v2035 = vshrl.u32 %v2034, 7
        %v2036 = vsub.s32 0, %v2035
        %v2037 = vrot.slane %v2032, %v2036
        %v2055 = vunpack.c.l.b16 %v2016
        %v2056 = vunpack.c.l.b16 %v2017
        %v2057 = vunpack.c.l.b16 %v2018
        %v2058 = vunpack.c.l.b16 %v2019
        %v2059 = vunpack.c.l.b16 %v2020
        %v2060 = vunpack.c.l.b16 %v2021
        %v2061 = vunpack.c.l.b16 %v2022
        %v2062 = vunpack.c.l.b16 %v2023
        %v2063 = vunpack.c.l.b16 %v2024
        %v2064 = vunpack.c.l.b16 %v2025
        %v2065 = vunpack.c.l.b16 %v2026
        %v2066 = vunpack.c.l.b16 %v2027
        %v2067 = vunpack.c.l.b16 %v2028
        %v2068 = vunpack.c.l.b16 %v2029
        %v2069 = vunpack.c.l.b16 %v2030
        %v2070 = vunpack.c.l.b16 %v2031
        %v2071 = vpack.c.b16 %v2056, %v2055
        %v2072 = vpack.c.b16 %v2058, %v2057
        %v2073 = vpack.c.b16 %v2060, %v2059
        %v2074 = vpack.c.b16 %v2062, %v2061
        %v2075 = vpack.c.b16 %v2064, %v2063
        %v2076 = vpack.c.b16 %v2066, %v2065
        %v2077 = vpack.c.b16 %v2068, %v2067
        %v2078 = vpack.c.b16 %v2070, %v2069
        %2087 = vmatprep.subr.bf16.mxu0 0
        %2088 = vmatpush1.bf16.msra.mxu0 %v2071
        %2089 = vmatprep.subr.bf16.mxu0 0
        %2090 = vmatpush1.bf16.msra.mxu0 %v2072
        %2091 = vmatprep.subr.bf16.mxu0 0
        %2092 = vmatpush1.bf16.msra.mxu0 %v2073
        %2093 = vmatprep.subr.bf16.mxu0 0
        %2094 = vmatpush1.bf16.msra.mxu0 %v2074
        %2095 = vmatprep.subr.bf16.mxu0 0
        %2096 = vmatpush1.bf16.msra.mxu0 %v2075
        %2097 = vmatprep.subr.bf16.mxu0 0
        %2098 = vmatpush1.bf16.msra.mxu0 %v2076
        %2099 = vmatprep.subr.bf16.mxu0 0
        %2100 = vmatpush1.bf16.msra.mxu0 %v2077
        %2101 = vmatprep.subr.bf16.mxu0 0
        %2102 = vmatpush1.bf16.msra.mxu0 %v2078
        %2103 = vmatprep.subr.bf16.mxu0 0
        %2104 = vmatpush1.bf16.msra.mxu0 0
        %2105 = vmatprep.subr.bf16.mxu0 0
        %2106 = vmatpush1.bf16.msra.mxu0 0
        %2107 = vmatprep.subr.bf16.mxu0 0
        %2108 = vmatpush1.bf16.msra.mxu0 0
        %2109 = vmatprep.subr.bf16.mxu0 0
        %2110 = vmatpush1.bf16.msra.mxu0 0
        %2111 = vmatprep.subr.bf16.mxu0 0
        %2112 = vmatpush1.bf16.msra.mxu0 0
        %2113 = vmatprep.subr.bf16.mxu0 0
        %2114 = vmatpush1.bf16.msra.mxu0 0
        %2115 = vmatprep.subr.bf16.mxu0 0
        %2116 = vmatpush1.bf16.msra.mxu0 0
        %2117 = vmatprep.subr.bf16.mxu0 0
        %2118 = vmatpush1.bf16.msra.mxu0 0
        %2119 = vmatprep.mubr.bf16.mxu0 0
        %2120 = vmatmul.mubr.bf16.gmra.mrb[0].mxu0 %v2008
        %v2121 = vpop.f32.mrb[0].mxu0
        %v2122 = vadd.f32 %v2037, %v2121
        %v2123 = vpop.f32.mrb[0].mxu0
        %v2124 = vpop.f32.mrb[0].mxu0
        %v2125 = vadd.f32 %v2037, %v2124
        %v2126 = vpop.f32.mrb[0].mxu0
        %2127 = vmatprep.mubr.bf16.mxu0 0
        %2128 = vmatmul.mubr.bf16.gmra.mrb[0].mxu0 %v2009
        %v2129 = vpop.f32.mrb[0].mxu0
        %v2130 = vadd.f32 %v2037, %v2129
        %v2131 = vpop.f32.mrb[0].mxu0
        %v2132 = vpop.f32.mrb[0].mxu0
        %v2133 = vadd.f32 %v2037, %v2132
        %v2134 = vpop.f32.mrb[0].mxu0
        %2135 = vmatprep.mubr.bf16.mxu0 0
        %2136 = vmatmul.mubr.bf16.gmra.mrb[0].mxu0 %v2010
        %v2137 = vpop.f32.mrb[0].mxu0
        %v2138 = vadd.f32 %v2037, %v2137
        %v2139 = vpop.f32.mrb[0].mxu0
        %v2140 = vpop.f32.mrb[0].mxu0
        %v2141 = vadd.f32 %v2037, %v2140
        %v2142 = vpop.f32.mrb[0].mxu0
        %2143 = vmatprep.mubr.bf16.mxu0 0
        %2144 = vmatmul.mubr.bf16.gmra.mrb[0].mxu0 %v2011
        %v2145 = vpop.f32.mrb[0].mxu0
        %v2146 = vadd.f32 %v2037, %v2145
        %v2147 = vpop.f32.mrb[0].mxu0
        %v2148 = vpop.f32.mrb[0].mxu0
        %v2149 = vadd.f32 %v2037, %v2148
        %v2150 = vpop.f32.mrb[0].mxu0
        %2151 = vmatprep.mubr.bf16.mxu0 0
        %2152 = vmatmul.mubr.bf16.gmra.mrb[0].mxu0 %v2012
        %v2153 = vpop.f32.mrb[0].mxu0
        %v2154 = vadd.f32 %v2037, %v2153
        %v2155 = vpop.f32.mrb[0].mxu0
        %v2156 = vpop.f32.mrb[0].mxu0
        %v2157 = vadd.f32 %v2037, %v2156
        %v2158 = vpop.f32.mrb[0].mxu0
        %2159 = vmatprep.mubr.bf16.mxu0 0
        %2160 = vmatmul.mubr.bf16.gmra.mrb[0].mxu0 %v2013
        %v2161 = vpop.f32.mrb[0].mxu0
        %v2162 = vadd.f32 %v2037, %v2161
        %v2163 = vpop.f32.mrb[0].mxu0
        %v2164 = vpop.f32.mrb[0].mxu0
        %v2165 = vadd.f32 %v2037, %v2164
        %v2166 = vpop.f32.mrb[0].mxu0
        %2167 = vmatprep.mubr.bf16.mxu0 0
        %2168 = vmatmul.mubr.bf16.gmra.mrb[0].mxu0 %v2014
        %v2169 = vpop.f32.mrb[0].mxu0
        %v2170 = vadd.f32 %v2037, %v2169
        %v2171 = vpop.f32.mrb[0].mxu0
        %v2172 = vpop.f32.mrb[0].mxu0
        %v2173 = vadd.f32 %v2037, %v2172
        %v2174 = vpop.f32.mrb[0].mxu0
        %2175 = vmatprep.mubr.bf16.mxu0 0
        %2176 = vmatmul.mubr.bf16.gmra.mrb[0].mxu0 %v2015
        %v2177 = vpop.f32.mrb[0].mxu0
        %v2178 = vadd.f32 %v2037, %v2177
        %v2179 = vpop.f32.mrb[0].mxu0
        %v2180 = vpop.f32.mrb[0].mxu0
        %v2181 = vadd.f32 %v2037, %v2180
        %v2182 = vpop.f32.mrb[0].mxu0
        %2183 = vdwg.mxu0
        %2184 = vst [vmem:[%s451] sm:$0xff] %v2122
        %2185 = vst [vmem:[%s451 + $0x8] sm:$0xff] %v2125
        %2186 = vst [vmem:[%s451 + $0x10] sm:$0xff] %v2130
        %2187 = vst [vmem:[%s451 + $0x18] sm:$0xff] %v2133
        %2188 = vst [vmem:[%s451 + $0x20] sm:$0xff] %v2138
        %2189 = vst [vmem:[%s451 + $0x28] sm:$0xff] %v2141
        %2190 = vst [vmem:[%s451 + $0x30] sm:$0xff] %v2146
        %2191 = vst [vmem:[%s451 + $0x38] sm:$0xff] %v2149
        %2192 = vst [vmem:[%s451 + $0x40] sm:$0xff] %v2154
        %2193 = vst [vmem:[%s451 + $0x48] sm:$0xff] %v2157
        %2194 = vst [vmem:[%s451 + $0x50] sm:$0xff] %v2162
        %2195 = vst [vmem:[%s451 + $0x58] sm:$0xff] %v2165
        %2196 = vst [vmem:[%s451 + $0x60] sm:$0xff] %v2170
        %2197 = vst [vmem:[%s451 + $0x68] sm:$0xff] %v2173
        %2198 = vst [vmem:[%s451 + $0x70] sm:$0xff] %v2178
        %2199 = vst [vmem:[%s451 + $0x78] sm:$0xff] %v2181
        %s2200 = sand.u32 %s217, 1
        %s2201 = scalar_lea.sflag [#allocation6], %s2200
        %s2202 = sand.u32 %s217, 1
        %s2203 = smul.addr %s2202, 128
        %s2204 = scalar_lea.vmem [#allocation16], %s2203
        // Predicated region
        $region81: #{tpu_custom_call.1} parent=47 // pred_check
          %p2205 = pneg %p227
        $region82: #{tpu_custom_call.1} parent=47 // pred_check_branch
          %2207 = sbr.rel (%p2205) target = $region84
        $region83: #{tpu_custom_call.1} parent=47 // pred_region
          %s2208 = smul.u32 16, %s34
          %s2210 = ssub.s32 2048, 2048
          %2211 = vsyncadd %s2201, %s2210
          %s2212 = smul.addr %s33, 16
          %s2213 = sadd.s32 %s2208, %s2212
          %s2214 = smul.addr %s2213, 128
          %s2215 = scalar_lea.hbm %s7, %s2214
          %s2216 = sshll.u32 %s2204, 4
          %s2217 = int_to_ptr.vmem [resolvable:$true] %s2216
          %2222 = dma.vmem_to_hbm [thread:$0]  %s2217, 2048, %s2215, %s2201, 128, 128, 8
        $region84: #{tpu_custom_call.1} parent=47 // pred_fallthru
          _
      $region48: #{tpu_custom_call.1} parent=5 // pred_fallthru
        _
      %p2223 = scmp.le.s32.totalorder 2, %s24
      // Predicated region
      $region85: #{tpu_custom_call.1} parent=5 // pred_check
        %p2224 = pneg %p2223
      $region86: #{tpu_custom_call.1} parent=5 // pred_check_branch
        %2226 = sbr.rel (%p2224) target = $region88
      $region87: #{tpu_custom_call.1} parent=5 // pred_region
        %s2227 = ssub.s32 %s24, 2
        // Predicated region
        $region89: #{tpu_custom_call.1} parent=87 // pred_check
          %p2228 = pneg %p233
        $region90: #{tpu_custom_call.1} parent=87 // pred_check_branch
          %2230 = sbr.rel (%p2228) target = $region92
        $region91: #{tpu_custom_call.1} parent=87 // pred_region
          %s2231 = sand.u32 %s218, 1
          %s2232 = scalar_lea.sflag [#allocation6], %s2231
          %s2233 = sand.u32 %s218, 1
          %s2234 = smul.addr %s2233, 128
          %s2235 = scalar_lea.vmem [#allocation16], %s2234
          %2236 = dma.done %s2232, 2048
        $region92: #{tpu_custom_call.1} parent=87 // pred_fallthru
          _
      $region88: #{tpu_custom_call.1} parent=5 // pred_fallthru
        _
    $region6: #{tpu_custom_call.1} parent=1 // loop_footer
      %s28 = sadd.s32 1, %s24
    $region7: #{tpu_custom_call.1} parent=1 // loop_footer_branch
      %23 = sbr.rel target = $region3
    $region8: #{tpu_custom_call.1} parent=1 // loop_exit
      _
    %2237 = vsyncpa [#allocation5], 1
    %s2238 = scalar_lea.sflag [#allocation5], 1
    %2239 = vsyncpa %s2238, 1
    %2240 = vsyncpa [#allocation8], 1
    %s2241 = scalar_lea.sflag [#allocation8], 1
    %2242 = vsyncpa %s2241, 1
    %2243 = vsyncpa [#allocation11], 1
    %2244 = vsyncpa [#allocation14], 1
    %2245 = vsyncpa [#allocation6], 1
    %s2246 = scalar_lea.sflag [#allocation6], 1
    %2247 = vsyncpa %s2246, 1

</llo_original>
